<compile_context>
chip_gen: v5e
topology: v5e:2x2
jax: 0.10.0
libtpu: 0.0.40
codegen_flags: <defaults>
</compile_context>

<pallas_src>
import functools

import jax
import jax.numpy as jnp
from jax.experimental import pallas as pl
from jax.experimental.pallas import tpu as pltpu


# -----------------------------------------------------------------------------
# Fused kernel: all TemporalBlocks + regressor for a TB-example batch tile.
# Activations are time-major: row = t*TB + b.
# -----------------------------------------------------------------------------
def _tcn_rul_kernel(*refs, batch_tile, seq_len, dilations, has_ds):
    TB = batch_tile
    L = seq_len
    N = TB * L

    it = iter(refs)
    x_ref = next(it)                         # (L, TB, Cin) time-major tile
    block_refs = []
    for ds in has_ds:
        n = 8 if ds else 6                   # w1a w1b b1 w2a w2b b2 [wd bd]
        block_refs.append(tuple(next(it) for _ in range(n)))
    reg_refs = tuple(next(it) for _ in range(6))
    out_ref = next(it)                       # (TB, OUT_W) lane-dense slab

    # Flatten (time, batch) into the matmul M dimension.
    h = x_ref[...].reshape(N, -1).astype(jnp.float32)          # (L*TB, Cin)
    row = jax.lax.broadcasted_iota(jnp.int32, (N, 1), 0)       # hoisted once

    def mm_f32(a, w):
        return jnp.dot(a, w, preferred_element_type=jnp.float32)

    # ---- temporal blocks (static unroll: few layers, different shapes) ------
    for d, ds, brefs in zip(dilations, has_ds, block_refs):
        if ds:
            w1a, w1b, b1, w2a, w2b, b2, wd, bd = brefs
        else:
            w1a, w1b, b1, w2a, w2b, b2 = brefs

        shift = d * TB
        causal = row >= shift                                  # (N, 1)

        def dilated_conv(inp, wa_ref, wb_ref, b_ref, shift=shift, causal=causal):
            # y[t] = Wa @ x[t-d] + Wb @ x[t] + b  (causal / "chomped").
            # The roll wraps rows with t < d from the end of the tile, but
            # those rows are zeroed by the mask (row >= d*TB), so there is no
            # wrap-around / cross-example leakage: shifts are whole multiples
            # of TB, so valid rows stay within the same example.
            prev = pltpu.roll(inp, shift=shift, axis=0)        # XLU slot
            prev = jnp.where(causal, prev, 0.0)
            wdt = wa_ref.dtype                                 # bf16 or f32
            return (jnp.dot(prev.astype(wdt), wa_ref[...],
                            preferred_element_type=jnp.float32)
                    + jnp.dot(inp.astype(wdt), wb_ref[...],
                              preferred_element_type=jnp.float32)
                    + b_ref[...])

        a = jnp.maximum(dilated_conv(h, w1a, w1b, b1), 0.0)    # conv1 + relu
        a = jnp.maximum(dilated_conv(a, w2a, w2b, b2), 0.0)    # conv2 + relu
        if ds:
            res = mm_f32(h, wd[...]) + bd[...]                 # 1x1 downsample (f32)
        else:
            res = h
        h = jnp.maximum(a + res, 0.0)                          # residual + relu

    # ---- features = last time step of every sequence: contiguous slice ------
    H = h.shape[1]
    feats = h[(L - 1) * TB:, :]                                # (TB, H)

    # ---- regressor: Linear->ReLU->Linear->ReLU->Linear (dropout=identity) ---
    rw1, rb1, rw2, rb2, rw3, rb3 = reg_refs
    z = jnp.maximum(mm_f32(feats, rw1[...]) + rb1[...], 0.0)
    z = jnp.maximum(mm_f32(z, rw2[...]) + rb2[...], 0.0)
    preds = mm_f32(z, rw3[...]) + rb3[...]                     # (TB, 1)

    # ---- lane-dense output slab: [pred | feats | zero padding] --------------
    out_w = out_ref.shape[1]
    parts = [preds, feats]
    pad_w = out_w - (1 + H)
    if pad_w > 0:
        parts.append(jnp.zeros((TB, pad_w), jnp.float32))
    out_ref[...] = jnp.concatenate(parts, axis=1)


# -----------------------------------------------------------------------------
# Batch-tile selection: VMEM-budget-driven, BlockSpec-rule compliant.
# -----------------------------------------------------------------------------
def _pick_batch_tile(B, L, c_max, vmem_budget_bytes):
    """Pick TB dividing B with TB % 8 == 0 or TB == B (second-minor block rule).

    Prefers tiles that (a) fit the f32 working-set budget, (b) leave >= 2 grid
    steps (v7x megacore sharding), (c) give the MXU >= 512 rows per step.
    """
    def work_bytes(tb):
        # ~6 live (tb*L, Cmax) f32 arrays, lanes padded to 128.
        return 6 * tb * L * max(c_max, 128) * 4

    cands = sorted({tb for tb in range(8, B + 1, 8) if B % tb == 0} | {B})
    fitting = [tb for tb in cands if work_bytes(tb) <= vmem_budget_bytes]
    if not fitting:
        return min(cands)
    multi = [tb for tb in fitting if B // tb >= 2]
    pool = multi if multi else fitting
    big = [tb for tb in pool if tb * L >= 512]
    return min(big) if big else max(pool)


# -----------------------------------------------------------------------------
# Wrapper: one fused pallas_call over batch tiles.
# -----------------------------------------------------------------------------
def tcn_rul_forward(x, params, dilations, *, use_bf16_mxu=False, x_layout="NCL"):
    """TCN_RUL forward.

    x: (B, C_in, L) PyTorch Conv1d layout ("NCL"), or (L, B, C_in) time-major
       ("LNC") from a pipeline that can provide it directly (skips the
       wrapper-side transpose / HBM round trip).
    Returns (predictions (B, 1), features (B, H)).
    """
    if x_layout == "NCL":
        x_t = jnp.transpose(x, (2, 0, 1))          # (L, B, Cin) time-major
    elif x_layout == "LNC":
        x_t = x
    else:
        raise ValueError(f"unknown layout {x_layout!r}")
    x_t = x_t.astype(jnp.float32)
    L, B, Cin = x_t.shape
    H = params["regressor"]["w1"].shape[0]

    channels = [Cin] + [p["w2b"].shape[1] for p in params["blocks"]]
    c_max = max(channels)
    TB = _pick_batch_tile(B, L, c_max, vmem_budget_bytes=40 << 20)
    assert B % TB == 0

    conv_dtype = jnp.bfloat16 if use_bf16_mxu else jnp.float32

    args = [x_t]
    in_specs = [pl.BlockSpec((L, TB, Cin), lambda b: (0, b, 0))]

    def add_const(a):
        # Weight/bias tile: full array, constant block index -> VMEM resident.
        # (Single-buffering these via pipeline_mode would save a bit more VMEM;
        #  omitted for portability across Pallas versions.)
        args.append(a)
        in_specs.append(pl.BlockSpec(a.shape, lambda b, nd=a.ndim: (0,) * nd))

    has_ds = []
    for p in params["blocks"]:
        ds = "wd" in p
        has_ds.append(ds)
        # Conv tap weights optionally bf16 (cast once here -> half DMA bytes
        # and VMEM residency); biases / residual 1x1 / regressor stay f32.
        add_const(p["w1a"].astype(conv_dtype))
        add_const(p["w1b"].astype(conv_dtype))
        add_const(p["b1"])
        add_const(p["w2a"].astype(conv_dtype))
        add_const(p["w2b"].astype(conv_dtype))
        add_const(p["b2"])
        if ds:
            add_const(p["wd"])
            add_const(p["bd"])
    r = params["regressor"]
    for n in ("w1", "b1", "w2", "b2", "w3", "b3"):
        add_const(r[n])

    out_w = max(128, ((1 + H + 127) // 128) * 128)

    # VMEM estimate -> raise the scoped limit if the default would cap the
    # tile; capped at 60 MiB so it is valid on v7x (64 MiB physical) too.
    weight_bytes = sum(int(a.size) * a.dtype.itemsize for a in args[1:])
    in_tile = TB * L * max(Cin, 128) * 4
    out_tile = TB * out_w * 4
    est = (2 * weight_bytes + 2 * in_tile + 2 * out_tile
           + 6 * TB * L * max(c_max, 128) * 4)
    vmem_limit = int(min(max(32 << 20, 2 * est), 60 << 20))

    kernel = functools.partial(
        _tcn_rul_kernel, batch_tile=TB, seq_len=L,
        dilations=tuple(dilations), has_ds=tuple(has_ds))

    slab = pl.pallas_call(
        kernel,
        out_shape=jax.ShapeDtypeStruct((B, out_w), jnp.float32),
        grid=(B // TB,),
        in_specs=in_specs,
        out_specs=pl.BlockSpec((TB, out_w), lambda b: (b, 0)),
        compiler_params=pltpu.CompilerParams(
            dimension_semantics=("parallel",),       # megacore sharding
            vmem_limit_bytes=vmem_limit),
    )(*args)

    preds = slab[:, 0:1]
    feats = slab[:, 1:1 + H]
    return preds, feats


# -----------------------------------------------------------------------------
# Parameter construction (deterministic, synthetic) + weight_norm folding.
# Conv taps are stored separately: w*a hits x[t-d], w*b hits x[t]; all weights
# are (in, out), biases (1, out).
# -----------------------------------------------------------------------------
def _fold_weight_norm(v, g):
    # effective weight = g * v / ||v||, norm over (C_in, K) per output channel
    norm = jnp.sqrt(jnp.sum(v * v, axis=(1, 2), keepdims=True))
    return g[:, None, None] * v / norm


def init_params(key, num_inputs, num_channels, kernel_size=2):
    assert kernel_size == 2, "TCN_RUL default kernel_size=2"
    params = {"blocks": [], "regressor": {}}
    dilations = []
    in_ch = num_inputs
    for i, out_ch in enumerate(num_channels):
        d = 2 ** i
        dilations.append(d)
        key, *ks = jax.random.split(key, 9)
        p = {}
        for idx, (ci, co) in enumerate([(in_ch, out_ch), (out_ch, out_ch)]):
            v = 0.01 * jax.random.normal(ks[3 * idx], (co, ci, kernel_size), jnp.float32)
            g = 1.0 + 0.1 * jax.random.normal(ks[3 * idx + 1], (co,), jnp.float32)
            w = _fold_weight_norm(v, g)                        # (co, ci, K)
            b = 0.05 * jax.random.normal(ks[3 * idx + 2], (co,), jnp.float32)
            tag = str(idx + 1)
            p["w" + tag + "a"] = jnp.transpose(w[:, :, 0])     # (ci, co): tap x[t-d]
            p["w" + tag + "b"] = jnp.transpose(w[:, :, 1])     # (ci, co): tap x[t]
            p["b" + tag] = b.reshape(1, co)
        if in_ch != out_ch:
            wd = 0.01 * jax.random.normal(ks[6], (out_ch, in_ch), jnp.float32)
            bd = 0.05 * jax.random.normal(ks[7], (out_ch,), jnp.float32)
            p["wd"] = jnp.transpose(wd)                        # (ci, co)
            p["bd"] = bd.reshape(1, out_ch)
        params["blocks"].append(p)
        in_ch = out_ch

    H = num_channels[-1]
    key, k1, k2, k3, k4, k5, k6 = jax.random.split(key, 7)
    params["regressor"] = {
        "w1": 0.1 * jax.random.normal(k1, (H, H), jnp.float32),
        "b1": 0.05 * jax.random.normal(k2, (1, H), jnp.float32),
        "w2": 0.1 * jax.random.normal(k3, (H, H // 2), jnp.float32),
        "b2": 0.05 * jax.random.normal(k4, (1, H // 2), jnp.float32),
        "w3": 0.1 * jax.random.normal(k5, (H // 2, 1), jnp.float32),
        "b3": 0.05 * jax.random.normal(k6, (1, 1), jnp.float32),
    }
    return params, dilations


# -----------------------------------------------------------------------------
# Pure-JAX reference (sanity check against the fused kernel).
# -----------------------------------------------------------------------------
def ref_forward(x_ncl, params, dilations):
    h = jnp.transpose(x_ncl, (0, 2, 1)).astype(jnp.float32)    # (B, L, C)
    for p, d in zip(params["blocks"], dilations):
        x = h
        L = x.shape[1]

        def conv(inp, wa, wb, b):
            prev = jnp.pad(inp, ((0, 0), (d, 0), (0, 0)))[:, :L, :]
            return prev @ wa + inp @ wb + b

        o = jax.nn.relu(conv(x, p["w1a"], p["w1b"], p["b1"]))
        o = jax.nn.relu(conv(o, p["w2a"], p["w2b"], p["b2"]))
        res = (x @ p["wd"] + p["bd"]) if "wd" in p else x
        h = jax.nn.relu(o + res)
    feats = h[:, -1, :]
    r = params["regressor"]
    z = jax.nn.relu(feats @ r["w1"] + r["b1"])
    z = jax.nn.relu(z @ r["w2"] + r["b2"])
    preds = z @ r["w3"] + r["b3"]
    return preds, feats


if __name__ == "__main__":
    # Small config consistent with TCN_RUL(num_inputs=4, num_channels=[8, 16])
    B, L = 2, 16
    num_inputs = 4
    num_channels = [8, 16]

    key = jax.random.PRNGKey(0)
    key, pkey, xkey = jax.random.split(key, 3)
    params, dilations = init_params(pkey, num_inputs, num_channels)

    # PyTorch Conv1d layout: (B, C_in, L)
    x = jax.random.normal(xkey, (B, num_inputs, L), jnp.float32)

    # f32 path (default).
    preds, feats = jax.block_until_ready(tcn_rul_forward(x, params, dilations))
    ref_preds, ref_feats = ref_forward(x, params, dilations)
    assert preds.shape == (B, 1) and feats.shape == (B, num_channels[-1])
    assert jnp.allclose(preds, ref_preds, atol=1e-4, rtol=1e-4)
    assert jnp.allclose(feats, ref_feats, atol=1e-4, rtol=1e-4)

    # bf16-at-MXU conv path (f32 accumulate; residual 1x1 + regressor stay f32).
    preds_bf, feats_bf = jax.block_until_ready(
        tcn_rul_forward(x, params, dilations, use_bf16_mxu=True))
    assert jnp.allclose(preds_bf, ref_preds, atol=5e-2, rtol=5e-2)
    assert jnp.allclose(feats_bf, ref_feats, atol=5e-2, rtol=5e-2)

    print("KERNEL_OK")
</pallas_src>

<mosaic_0001>
module attributes {stable_mosaic.version = 11 : i64} {
  func.func @_tcn_rul_kernel(%arg0: i32, %arg1: memref<16x2x4xf32, #tpu.memory_space<vmem>>, %arg2: memref<4x8xf32, #tpu.memory_space<vmem>>, %arg3: memref<4x8xf32, #tpu.memory_space<vmem>>, %arg4: memref<1x8xf32, #tpu.memory_space<vmem>>, %arg5: memref<8x8xf32, #tpu.memory_space<vmem>>, %arg6: memref<8x8xf32, #tpu.memory_space<vmem>>, %arg7: memref<1x8xf32, #tpu.memory_space<vmem>>, %arg8: memref<4x8xf32, #tpu.memory_space<vmem>>, %arg9: memref<1x8xf32, #tpu.memory_space<vmem>>, %arg10: memref<8x16xf32, #tpu.memory_space<vmem>>, %arg11: memref<8x16xf32, #tpu.memory_space<vmem>>, %arg12: memref<1x16xf32, #tpu.memory_space<vmem>>, %arg13: memref<16x16xf32, #tpu.memory_space<vmem>>, %arg14: memref<16x16xf32, #tpu.memory_space<vmem>>, %arg15: memref<1x16xf32, #tpu.memory_space<vmem>>, %arg16: memref<8x16xf32, #tpu.memory_space<vmem>>, %arg17: memref<1x16xf32, #tpu.memory_space<vmem>>, %arg18: memref<16x16xf32, #tpu.memory_space<vmem>>, %arg19: memref<1x16xf32, #tpu.memory_space<vmem>>, %arg20: memref<16x8xf32, #tpu.memory_space<vmem>>, %arg21: memref<1x8xf32, #tpu.memory_space<vmem>>, %arg22: memref<8x1xf32, #tpu.memory_space<vmem>>, %arg23: memref<1x1xf32, #tpu.memory_space<vmem>>, %arg24: memref<2x128xf32, #tpu.memory_space<vmem>>) attributes {dimension_semantics = [#tpu.dimension_semantics<parallel>], iteration_bounds = array<i64: 1>, scalar_prefetch = 0 : i64, scratch_operands = 0 : i64, tpu.core_type = #tpu.core_type<tc>, window_params = [{transform_indices = @transform_0, window_bounds = array<i64: 16, 2, 4>}, {pipeline_mode = #tpu.pipeline_mode<synchronous>, transform_indices = @transform_1, window_bounds = array<i64: 4, 8>}, {pipeline_mode = #tpu.pipeline_mode<synchronous>, transform_indices = @transform_2, window_bounds = array<i64: 4, 8>}, {pipeline_mode = #tpu.pipeline_mode<synchronous>, transform_indices = @transform_3, window_bounds = array<i64: 1, 8>}, {pipeline_mode = #tpu.pipeline_mode<synchronous>, transform_indices = @transform_4, window_bounds = array<i64: 8, 8>}, {pipeline_mode = #tpu.pipeline_mode<synchronous>, transform_indices = @transform_5, window_bounds = array<i64: 8, 8>}, {pipeline_mode = #tpu.pipeline_mode<synchronous>, transform_indices = @transform_6, window_bounds = array<i64: 1, 8>}, {pipeline_mode = #tpu.pipeline_mode<synchronous>, transform_indices = @transform_7, window_bounds = array<i64: 4, 8>}, {pipeline_mode = #tpu.pipeline_mode<synchronous>, transform_indices = @transform_8, window_bounds = array<i64: 1, 8>}, {pipeline_mode = #tpu.pipeline_mode<synchronous>, transform_indices = @transform_9, window_bounds = array<i64: 8, 16>}, {pipeline_mode = #tpu.pipeline_mode<synchronous>, transform_indices = @transform_10, window_bounds = array<i64: 8, 16>}, {pipeline_mode = #tpu.pipeline_mode<synchronous>, transform_indices = @transform_11, window_bounds = array<i64: 1, 16>}, {pipeline_mode = #tpu.pipeline_mode<synchronous>, transform_indices = @transform_12, window_bounds = array<i64: 16, 16>}, {pipeline_mode = #tpu.pipeline_mode<synchronous>, transform_indices = @transform_13, window_bounds = array<i64: 16, 16>}, {pipeline_mode = #tpu.pipeline_mode<synchronous>, transform_indices = @transform_14, window_bounds = array<i64: 1, 16>}, {pipeline_mode = #tpu.pipeline_mode<synchronous>, transform_indices = @transform_15, window_bounds = array<i64: 8, 16>}, {pipeline_mode = #tpu.pipeline_mode<synchronous>, transform_indices = @transform_16, window_bounds = array<i64: 1, 16>}, {pipeline_mode = #tpu.pipeline_mode<synchronous>, transform_indices = @transform_17, window_bounds = array<i64: 16, 16>}, {pipeline_mode = #tpu.pipeline_mode<synchronous>, transform_indices = @transform_18, window_bounds = array<i64: 1, 16>}, {pipeline_mode = #tpu.pipeline_mode<synchronous>, transform_indices = @transform_19, window_bounds = array<i64: 16, 8>}, {pipeline_mode = #tpu.pipeline_mode<synchronous>, transform_indices = @transform_20, window_bounds = array<i64: 1, 8>}, {pipeline_mode = #tpu.pipeline_mode<synchronous>, transform_indices = @transform_21, window_bounds = array<i64: 8, 1>}, {pipeline_mode = #tpu.pipeline_mode<synchronous>, transform_indices = @transform_22, window_bounds = array<i64: 1, 1>}, {transform_indices = @transform_23, window_bounds = array<i64: 2, 128>}]} {
    %c0 = arith.constant 0 : index
    %c0_0 = arith.constant 0 : index
    %c0_1 = arith.constant 0 : index
    %0 = vector.load %arg1[%c0, %c0_0, %c0_1] : memref<16x2x4xf32, #tpu.memory_space<vmem>>, vector<16x2x4xf32>
    %1 = vector.shape_cast %0 : vector<16x2x4xf32> to vector<32x4xf32>
    %2 = tpu.iota {dimensions = array<i32: 0>} : vector<32x1xi32>
    %c2_i32 = arith.constant 2 : i32
    %3 = vector.broadcast %c2_i32 : i32 to vector<32x1xi32>
    %4 = arith.cmpi sge, %2, %3 : vector<32x1xi32>
    %c2_i32_2 = arith.constant 2 : i32
    %5 = tpu.dynamic_rotate %1 by %c2_i32_2 dim 0 : vector<32x4xf32>, i32 -> vector<32x4xf32>
    %cst = arith.constant 0.000000e+00 : f32
    %6 = vector.shape_cast %4 : vector<32x1xi1> to vector<32x1xi1>
    %7 = vector.broadcast %6 : vector<32x1xi1> to vector<32x4xi1>
    %8 = vector.broadcast %cst : f32 to vector<32x4xf32>
    %9 = arith.select %7, %5, %8 : vector<32x4xi1>, vector<32x4xf32>
    %c0_3 = arith.constant 0 : index
    %c0_4 = arith.constant 0 : index
    %10 = vector.load %arg2[%c0_3, %c0_4] : memref<4x8xf32, #tpu.memory_space<vmem>>, vector<4x8xf32>
    %cst_5 = arith.constant dense<0.000000e+00> : vector<32x8xf32>
    %11 = tpu.matmul %9, %10, %cst_5 {dimension_numbers = #tpu.dot_dimension_numbers<[1], [0], [0], [1], [0, 0, 1, 1], [], []>} : vector<32x4xf32>, vector<4x8xf32>, vector<32x8xf32> -> vector<32x8xf32>
    %c0_6 = arith.constant 0 : index
    %c0_7 = arith.constant 0 : index
    %12 = vector.load %arg3[%c0_6, %c0_7] : memref<4x8xf32, #tpu.memory_space<vmem>>, vector<4x8xf32>
    %cst_8 = arith.constant dense<0.000000e+00> : vector<32x8xf32>
    %13 = tpu.matmul %1, %12, %cst_8 {dimension_numbers = #tpu.dot_dimension_numbers<[1], [0], [0], [1], [0, 0, 1, 1], [], []>} : vector<32x4xf32>, vector<4x8xf32>, vector<32x8xf32> -> vector<32x8xf32>
    %14 = arith.addf %11, %13 : vector<32x8xf32>
    %c0_9 = arith.constant 0 : index
    %c0_10 = arith.constant 0 : index
    %15 = vector.load %arg4[%c0_9, %c0_10] : memref<1x8xf32, #tpu.memory_space<vmem>>, vector<1x8xf32>
    %16 = vector.broadcast %15 : vector<1x8xf32> to vector<32x8xf32>
    %17 = arith.addf %14, %16 : vector<32x8xf32>
    %cst_11 = arith.constant 0.000000e+00 : f32
    %18 = vector.broadcast %cst_11 : f32 to vector<32x8xf32>
    %19 = arith.maximumf %17, %18 : vector<32x8xf32>
    %c2_i32_12 = arith.constant 2 : i32
    %20 = tpu.dynamic_rotate %19 by %c2_i32_12 dim 0 : vector<32x8xf32>, i32 -> vector<32x8xf32>
    %cst_13 = arith.constant 0.000000e+00 : f32
    %21 = vector.shape_cast %4 : vector<32x1xi1> to vector<32x1xi1>
    %22 = vector.broadcast %21 : vector<32x1xi1> to vector<32x8xi1>
    %23 = vector.broadcast %cst_13 : f32 to vector<32x8xf32>
    %24 = arith.select %22, %20, %23 : vector<32x8xi1>, vector<32x8xf32>
    %c0_14 = arith.constant 0 : index
    %c0_15 = arith.constant 0 : index
    %25 = vector.load %arg5[%c0_14, %c0_15] : memref<8x8xf32, #tpu.memory_space<vmem>>, vector<8x8xf32>
    %cst_16 = arith.constant dense<0.000000e+00> : vector<32x8xf32>
    %26 = tpu.matmul %24, %25, %cst_16 {dimension_numbers = #tpu.dot_dimension_numbers<[1], [0], [0], [1], [0, 0, 1, 1], [], []>} : vector<32x8xf32>, vector<8x8xf32>, vector<32x8xf32> -> vector<32x8xf32>
    %c0_17 = arith.constant 0 : index
    %c0_18 = arith.constant 0 : index
    %27 = vector.load %arg6[%c0_17, %c0_18] : memref<8x8xf32, #tpu.memory_space<vmem>>, vector<8x8xf32>
    %cst_19 = arith.constant dense<0.000000e+00> : vector<32x8xf32>
    %28 = tpu.matmul %19, %27, %cst_19 {dimension_numbers = #tpu.dot_dimension_numbers<[1], [0], [0], [1], [0, 0, 1, 1], [], []>} : vector<32x8xf32>, vector<8x8xf32>, vector<32x8xf32> -> vector<32x8xf32>
    %29 = arith.addf %26, %28 : vector<32x8xf32>
    %c0_20 = arith.constant 0 : index
    %c0_21 = arith.constant 0 : index
    %30 = vector.load %arg7[%c0_20, %c0_21] : memref<1x8xf32, #tpu.memory_space<vmem>>, vector<1x8xf32>
    %31 = vector.broadcast %30 : vector<1x8xf32> to vector<32x8xf32>
    %32 = arith.addf %29, %31 : vector<32x8xf32>
    %cst_22 = arith.constant 0.000000e+00 : f32
    %33 = vector.broadcast %cst_22 : f32 to vector<32x8xf32>
    %34 = arith.maximumf %32, %33 : vector<32x8xf32>
    %c0_23 = arith.constant 0 : index
    %c0_24 = arith.constant 0 : index
    %35 = vector.load %arg8[%c0_23, %c0_24] : memref<4x8xf32, #tpu.memory_space<vmem>>, vector<4x8xf32>
    %cst_25 = arith.constant dense<0.000000e+00> : vector<32x8xf32>
    %36 = tpu.matmul %1, %35, %cst_25 {dimension_numbers = #tpu.dot_dimension_numbers<[1], [0], [0], [1], [0, 0, 1, 1], [], []>} : vector<32x4xf32>, vector<4x8xf32>, vector<32x8xf32> -> vector<32x8xf32>
    %c0_26 = arith.constant 0 : index
    %c0_27 = arith.constant 0 : index
    %37 = vector.load %arg9[%c0_26, %c0_27] : memref<1x8xf32, #tpu.memory_space<vmem>>, vector<1x8xf32>
    %38 = vector.broadcast %37 : vector<1x8xf32> to vector<32x8xf32>
    %39 = arith.addf %36, %38 : vector<32x8xf32>
    %40 = arith.addf %34, %39 : vector<32x8xf32>
    %cst_28 = arith.constant 0.000000e+00 : f32
    %41 = vector.broadcast %cst_28 : f32 to vector<32x8xf32>
    %42 = arith.maximumf %40, %41 : vector<32x8xf32>
    %c4_i32 = arith.constant 4 : i32
    %43 = vector.broadcast %c4_i32 : i32 to vector<32x1xi32>
    %44 = arith.cmpi sge, %2, %43 : vector<32x1xi32>
    %c4_i32_29 = arith.constant 4 : i32
    %45 = tpu.dynamic_rotate %42 by %c4_i32_29 dim 0 : vector<32x8xf32>, i32 -> vector<32x8xf32>
    %cst_30 = arith.constant 0.000000e+00 : f32
    %46 = vector.shape_cast %44 : vector<32x1xi1> to vector<32x1xi1>
    %47 = vector.broadcast %46 : vector<32x1xi1> to vector<32x8xi1>
    %48 = vector.broadcast %cst_30 : f32 to vector<32x8xf32>
    %49 = arith.select %47, %45, %48 : vector<32x8xi1>, vector<32x8xf32>
    %c0_31 = arith.constant 0 : index
    %c0_32 = arith.constant 0 : index
    %50 = vector.load %arg10[%c0_31, %c0_32] : memref<8x16xf32, #tpu.memory_space<vmem>>, vector<8x16xf32>
    %cst_33 = arith.constant dense<0.000000e+00> : vector<32x16xf32>
    %51 = tpu.matmul %49, %50, %cst_33 {dimension_numbers = #tpu.dot_dimension_numbers<[1], [0], [0], [1], [0, 0, 1, 1], [], []>} : vector<32x8xf32>, vector<8x16xf32>, vector<32x16xf32> -> vector<32x16xf32>
    %c0_34 = arith.constant 0 : index
    %c0_35 = arith.constant 0 : index
    %52 = vector.load %arg11[%c0_34, %c0_35] : memref<8x16xf32, #tpu.memory_space<vmem>>, vector<8x16xf32>
    %cst_36 = arith.constant dense<0.000000e+00> : vector<32x16xf32>
    %53 = tpu.matmul %42, %52, %cst_36 {dimension_numbers = #tpu.dot_dimension_numbers<[1], [0], [0], [1], [0, 0, 1, 1], [], []>} : vector<32x8xf32>, vector<8x16xf32>, vector<32x16xf32> -> vector<32x16xf32>
    %54 = arith.addf %51, %53 : vector<32x16xf32>
    %c0_37 = arith.constant 0 : index
    %c0_38 = arith.constant 0 : index
    %55 = vector.load %arg12[%c0_37, %c0_38] : memref<1x16xf32, #tpu.memory_space<vmem>>, vector<1x16xf32>
    %56 = vector.broadcast %55 : vector<1x16xf32> to vector<32x16xf32>
    %57 = arith.addf %54, %56 : vector<32x16xf32>
    %cst_39 = arith.constant 0.000000e+00 : f32
    %58 = vector.broadcast %cst_39 : f32 to vector<32x16xf32>
    %59 = arith.maximumf %57, %58 : vector<32x16xf32>
    %c4_i32_40 = arith.constant 4 : i32
    %60 = tpu.dynamic_rotate %59 by %c4_i32_40 dim 0 : vector<32x16xf32>, i32 -> vector<32x16xf32>
    %cst_41 = arith.constant 0.000000e+00 : f32
    %61 = vector.shape_cast %44 : vector<32x1xi1> to vector<32x1xi1>
    %62 = vector.broadcast %61 : vector<32x1xi1> to vector<32x16xi1>
    %63 = vector.broadcast %cst_41 : f32 to vector<32x16xf32>
    %64 = arith.select %62, %60, %63 : vector<32x16xi1>, vector<32x16xf32>
    %c0_42 = arith.constant 0 : index
    %c0_43 = arith.constant 0 : index
    %65 = vector.load %arg13[%c0_42, %c0_43] : memref<16x16xf32, #tpu.memory_space<vmem>>, vector<16x16xf32>
    %cst_44 = arith.constant dense<0.000000e+00> : vector<32x16xf32>
    %66 = tpu.matmul %64, %65, %cst_44 {dimension_numbers = #tpu.dot_dimension_numbers<[1], [0], [0], [1], [0, 0, 1, 1], [], []>} : vector<32x16xf32>, vector<16x16xf32>, vector<32x16xf32> -> vector<32x16xf32>
    %c0_45 = arith.constant 0 : index
    %c0_46 = arith.constant 0 : index
    %67 = vector.load %arg14[%c0_45, %c0_46] : memref<16x16xf32, #tpu.memory_space<vmem>>, vector<16x16xf32>
    %cst_47 = arith.constant dense<0.000000e+00> : vector<32x16xf32>
    %68 = tpu.matmul %59, %67, %cst_47 {dimension_numbers = #tpu.dot_dimension_numbers<[1], [0], [0], [1], [0, 0, 1, 1], [], []>} : vector<32x16xf32>, vector<16x16xf32>, vector<32x16xf32> -> vector<32x16xf32>
    %69 = arith.addf %66, %68 : vector<32x16xf32>
    %c0_48 = arith.constant 0 : index
    %c0_49 = arith.constant 0 : index
    %70 = vector.load %arg15[%c0_48, %c0_49] : memref<1x16xf32, #tpu.memory_space<vmem>>, vector<1x16xf32>
    %71 = vector.broadcast %70 : vector<1x16xf32> to vector<32x16xf32>
    %72 = arith.addf %69, %71 : vector<32x16xf32>
    %cst_50 = arith.constant 0.000000e+00 : f32
    %73 = vector.broadcast %cst_50 : f32 to vector<32x16xf32>
    %74 = arith.maximumf %72, %73 : vector<32x16xf32>
    %c0_51 = arith.constant 0 : index
    %c0_52 = arith.constant 0 : index
    %75 = vector.load %arg16[%c0_51, %c0_52] : memref<8x16xf32, #tpu.memory_space<vmem>>, vector<8x16xf32>
    %cst_53 = arith.constant dense<0.000000e+00> : vector<32x16xf32>
    %76 = tpu.matmul %42, %75, %cst_53 {dimension_numbers = #tpu.dot_dimension_numbers<[1], [0], [0], [1], [0, 0, 1, 1], [], []>} : vector<32x8xf32>, vector<8x16xf32>, vector<32x16xf32> -> vector<32x16xf32>
    %c0_54 = arith.constant 0 : index
    %c0_55 = arith.constant 0 : index
    %77 = vector.load %arg17[%c0_54, %c0_55] : memref<1x16xf32, #tpu.memory_space<vmem>>, vector<1x16xf32>
    %78 = vector.broadcast %77 : vector<1x16xf32> to vector<32x16xf32>
    %79 = arith.addf %76, %78 : vector<32x16xf32>
    %80 = arith.addf %74, %79 : vector<32x16xf32>
    %cst_56 = arith.constant 0.000000e+00 : f32
    %81 = vector.broadcast %cst_56 : f32 to vector<32x16xf32>
    %82 = arith.maximumf %80, %81 : vector<32x16xf32>
    %83 = vector.extract_strided_slice %82 {offsets = [30, 0], sizes = [2, 16], strides = [1, 1]} : vector<32x16xf32> to vector<2x16xf32>
    %c0_57 = arith.constant 0 : index
    %c0_58 = arith.constant 0 : index
    %84 = vector.load %arg18[%c0_57, %c0_58] : memref<16x16xf32, #tpu.memory_space<vmem>>, vector<16x16xf32>
    %cst_59 = arith.constant dense<0.000000e+00> : vector<2x16xf32>
    %85 = tpu.matmul %83, %84, %cst_59 {dimension_numbers = #tpu.dot_dimension_numbers<[1], [0], [0], [1], [0, 0, 1, 1], [], []>} : vector<2x16xf32>, vector<16x16xf32>, vector<2x16xf32> -> vector<2x16xf32>
    %c0_60 = arith.constant 0 : index
    %c0_61 = arith.constant 0 : index
    %86 = vector.load %arg19[%c0_60, %c0_61] : memref<1x16xf32, #tpu.memory_space<vmem>>, vector<1x16xf32>
    %87 = vector.broadcast %86 : vector<1x16xf32> to vector<2x16xf32>
    %88 = arith.addf %85, %87 : vector<2x16xf32>
    %cst_62 = arith.constant 0.000000e+00 : f32
    %89 = vector.broadcast %cst_62 : f32 to vector<2x16xf32>
    %90 = arith.maximumf %88, %89 : vector<2x16xf32>
    %c0_63 = arith.constant 0 : index
    %c0_64 = arith.constant 0 : index
    %91 = vector.load %arg20[%c0_63, %c0_64] : memref<16x8xf32, #tpu.memory_space<vmem>>, vector<16x8xf32>
    %cst_65 = arith.constant dense<0.000000e+00> : vector<2x8xf32>
    %92 = tpu.matmul %90, %91, %cst_65 {dimension_numbers = #tpu.dot_dimension_numbers<[1], [0], [0], [1], [0, 0, 1, 1], [], []>} : vector<2x16xf32>, vector<16x8xf32>, vector<2x8xf32> -> vector<2x8xf32>
    %c0_66 = arith.constant 0 : index
    %c0_67 = arith.constant 0 : index
    %93 = vector.load %arg21[%c0_66, %c0_67] : memref<1x8xf32, #tpu.memory_space<vmem>>, vector<1x8xf32>
    %94 = vector.broadcast %93 : vector<1x8xf32> to vector<2x8xf32>
    %95 = arith.addf %92, %94 : vector<2x8xf32>
    %cst_68 = arith.constant 0.000000e+00 : f32
    %96 = vector.broadcast %cst_68 : f32 to vector<2x8xf32>
    %97 = arith.maximumf %95, %96 : vector<2x8xf32>
    %c0_69 = arith.constant 0 : index
    %c0_70 = arith.constant 0 : index
    %98 = vector.load %arg22[%c0_69, %c0_70] : memref<8x1xf32, #tpu.memory_space<vmem>>, vector<8x1xf32>
    %cst_71 = arith.constant dense<0.000000e+00> : vector<2x1xf32>
    %99 = tpu.matmul %97, %98, %cst_71 {dimension_numbers = #tpu.dot_dimension_numbers<[1], [0], [0], [1], [0, 0, 1, 1], [], []>} : vector<2x8xf32>, vector<8x1xf32>, vector<2x1xf32> -> vector<2x1xf32>
    %c0_72 = arith.constant 0 : index
    %c0_73 = arith.constant 0 : index
    %100 = vector.load %arg23[%c0_72, %c0_73] : memref<1x1xf32, #tpu.memory_space<vmem>>, vector<1x1xf32>
    %101 = vector.broadcast %100 : vector<1x1xf32> to vector<2x1xf32>
    %102 = arith.addf %99, %101 : vector<2x1xf32>
    %cst_74 = arith.constant 0.000000e+00 : f32
    %103 = vector.broadcast %cst_74 : f32 to vector<2x111xf32>
    %104 = tpu.concatenate %102, %83, %103 in 1 : vector<2x1xf32>, vector<2x16xf32>, vector<2x111xf32> -> vector<2x128xf32>
    %c0_75 = arith.constant 0 : index
    %c0_76 = arith.constant 0 : index
    %105 = vector.load %arg24[%c0_75, %c0_76] : memref<2x128xf32, #tpu.memory_space<vmem>>, vector<2x128xf32>
    tpu.vector_store %arg24[%c0_75, %c0_76], %104 {strides = array<i32>} : memref<2x128xf32, #tpu.memory_space<vmem>>, vector<2x128xf32>,
    return
  }
  func.func @transform_0(%arg0: i32) -> (i32, i32, i32) {
    %c0_i32 = arith.constant 0 : i32
    %c0_i32_0 = arith.constant 0 : i32
    %c0_i32_1 = arith.constant 0 : i32
    return %c0_i32, %arg0, %c0_i32_0 : i32, i32, i32
  }
  func.func @transform_1(%arg0: i32) -> (i32, i32) {
    %c0_i32 = arith.constant 0 : i32
    %c0_i32_0 = arith.constant 0 : i32
    %c0_i32_1 = arith.constant 0 : i32
    return %c0_i32, %c0_i32_0 : i32, i32
  }
  func.func @transform_2(%arg0: i32) -> (i32, i32) {
    %c0_i32 = arith.constant 0 : i32
    %c0_i32_0 = arith.constant 0 : i32
    %c0_i32_1 = arith.constant 0 : i32
    return %c0_i32, %c0_i32_0 : i32, i32
  }
  func.func @transform_3(%arg0: i32) -> (i32, i32) {
    %c0_i32 = arith.constant 0 : i32
    %c0_i32_0 = arith.constant 0 : i32
    %c0_i32_1 = arith.constant 0 : i32
    return %c0_i32, %c0_i32_0 : i32, i32
  }
  func.func @transform_4(%arg0: i32) -> (i32, i32) {
    %c0_i32 = arith.constant 0 : i32
    %c0_i32_0 = arith.constant 0 : i32
    %c0_i32_1 = arith.constant 0 : i32
    return %c0_i32, %c0_i32_0 : i32, i32
  }
  func.func @transform_5(%arg0: i32) -> (i32, i32) {
    %c0_i32 = arith.constant 0 : i32
    %c0_i32_0 = arith.constant 0 : i32
    %c0_i32_1 = arith.constant 0 : i32
    return %c0_i32, %c0_i32_0 : i32, i32
  }
  func.func @transform_6(%arg0: i32) -> (i32, i32) {
    %c0_i32 = arith.constant 0 : i32
    %c0_i32_0 = arith.constant 0 : i32
    %c0_i32_1 = arith.constant 0 : i32
    return %c0_i32, %c0_i32_0 : i32, i32
  }
  func.func @transform_7(%arg0: i32) -> (i32, i32) {
    %c0_i32 = arith.constant 0 : i32
    %c0_i32_0 = arith.constant 0 : i32
    %c0_i32_1 = arith.constant 0 : i32
    return %c0_i32, %c0_i32_0 : i32, i32
  }
  func.func @transform_8(%arg0: i32) -> (i32, i32) {
    %c0_i32 = arith.constant 0 : i32
    %c0_i32_0 = arith.constant 0 : i32
    %c0_i32_1 = arith.constant 0 : i32
    return %c0_i32, %c0_i32_0 : i32, i32
  }
  func.func @transform_9(%arg0: i32) -> (i32, i32) {
    %c0_i32 = arith.constant 0 : i32
    %c0_i32_0 = arith.constant 0 : i32
    %c0_i32_1 = arith.constant 0 : i32
    return %c0_i32, %c0_i32_0 : i32, i32
  }
  func.func @transform_10(%arg0: i32) -> (i32, i32) {
    %c0_i32 = arith.constant 0 : i32
    %c0_i32_0 = arith.constant 0 : i32
    %c0_i32_1 = arith.constant 0 : i32
    return %c0_i32, %c0_i32_0 : i32, i32
  }
  func.func @transform_11(%arg0: i32) -> (i32, i32) {
    %c0_i32 = arith.constant 0 : i32
    %c0_i32_0 = arith.constant 0 : i32
    %c0_i32_1 = arith.constant 0 : i32
    return %c0_i32, %c0_i32_0 : i32, i32
  }
  func.func @transform_12(%arg0: i32) -> (i32, i32) {
    %c0_i32 = arith.constant 0 : i32
    %c0_i32_0 = arith.constant 0 : i32
    %c0_i32_1 = arith.constant 0 : i32
    return %c0_i32, %c0_i32_0 : i32, i32
  }
  func.func @transform_13(%arg0: i32) -> (i32, i32) {
    %c0_i32 = arith.constant 0 : i32
    %c0_i32_0 = arith.constant 0 : i32
    %c0_i32_1 = arith.constant 0 : i32
    return %c0_i32, %c0_i32_0 : i32, i32
  }
  func.func @transform_14(%arg0: i32) -> (i32, i32) {
    %c0_i32 = arith.constant 0 : i32
    %c0_i32_0 = arith.constant 0 : i32
    %c0_i32_1 = arith.constant 0 : i32
    return %c0_i32, %c0_i32_0 : i32, i32
  }
  func.func @transform_15(%arg0: i32) -> (i32, i32) {
    %c0_i32 = arith.constant 0 : i32
    %c0_i32_0 = arith.constant 0 : i32
    %c0_i32_1 = arith.constant 0 : i32
    return %c0_i32, %c0_i32_0 : i32, i32
  }
  func.func @transform_16(%arg0: i32) -> (i32, i32) {
    %c0_i32 = arith.constant 0 : i32
    %c0_i32_0 = arith.constant 0 : i32
    %c0_i32_1 = arith.constant 0 : i32
    return %c0_i32, %c0_i32_0 : i32, i32
  }
  func.func @transform_17(%arg0: i32) -> (i32, i32) {
    %c0_i32 = arith.constant 0 : i32
    %c0_i32_0 = arith.constant 0 : i32
    %c0_i32_1 = arith.constant 0 : i32
    return %c0_i32, %c0_i32_0 : i32, i32
  }
  func.func @transform_18(%arg0: i32) -> (i32, i32) {
    %c0_i32 = arith.constant 0 : i32
    %c0_i32_0 = arith.constant 0 : i32
    %c0_i32_1 = arith.constant 0 : i32
    return %c0_i32, %c0_i32_0 : i32, i32
  }
  func.func @transform_19(%arg0: i32) -> (i32, i32) {
    %c0_i32 = arith.constant 0 : i32
    %c0_i32_0 = arith.constant 0 : i32
    %c0_i32_1 = arith.constant 0 : i32
    return %c0_i32, %c0_i32_0 : i32, i32
  }
  func.func @transform_20(%arg0: i32) -> (i32, i32) {
    %c0_i32 = arith.constant 0 : i32
    %c0_i32_0 = arith.constant 0 : i32
    %c0_i32_1 = arith.constant 0 : i32
    return %c0_i32, %c0_i32_0 : i32, i32
  }
  func.func @transform_21(%arg0: i32) -> (i32, i32) {
    %c0_i32 = arith.constant 0 : i32
    %c0_i32_0 = arith.constant 0 : i32
    %c0_i32_1 = arith.constant 0 : i32
    return %c0_i32, %c0_i32_0 : i32, i32
  }
  func.func @transform_22(%arg0: i32) -> (i32, i32) {
    %c0_i32 = arith.constant 0 : i32
    %c0_i32_0 = arith.constant 0 : i32
    %c0_i32_1 = arith.constant 0 : i32
    return %c0_i32, %c0_i32_0 : i32, i32
  }
  func.func @transform_23(%arg0: i32) -> (i32, i32) {
    %c0_i32 = arith.constant 0 : i32
    %c0_i32_0 = arith.constant 0 : i32
    return %arg0, %c0_i32 : i32, i32
  }
}

</mosaic_0001>

<llo_original>
// kernel: tpu_custom_call.1
$region0: #{tpu_custom_call.1}
  #allocation0 [shape = 'u32[]', space=smem, size = 0x4, offset = 0x4, fixed_abs, tag = 'smem constant byte address 0x4 - core index']
  #allocation1 [shape = 'u32[72,128]{1,0:T(1,128)}', space=vmem, size = 0x9000, scoped, tag = 'internal scratch']
  #allocation2 [shape = 'f32[1,1]{1,0:T(1,128)S(1)}', space=vmem, size = 0x200, scoped, tag = 'scoped memory for tpu_custom_call.1']
  %s0 = inlined_call_operand.vmem [shape: f32[16,2,4], index: 0, kind: input, shape index: {}]
  %s1 = inlined_call_operand.hbm [shape: f32[4,8], index: 1, kind: input, shape index: {}]
  %s2 = inlined_call_operand.hbm [shape: f32[4,8], index: 2, kind: input, shape index: {}]
  %s3 = inlined_call_operand.vmem [shape: f32[1,8], index: 3, kind: input, shape index: {}]
  %s4 = inlined_call_operand.vmem [shape: f32[8,8], index: 4, kind: input, shape index: {}]
  %s5 = inlined_call_operand.hbm [shape: f32[8,8], index: 5, kind: input, shape index: {}]
  %s6 = inlined_call_operand.hbm [shape: f32[1,8], index: 6, kind: input, shape index: {}]
  %s7 = inlined_call_operand.hbm [shape: f32[4,8], index: 7, kind: input, shape index: {}]
  %s8 = inlined_call_operand.hbm [shape: f32[1,8], index: 8, kind: input, shape index: {}]
  %s9 = inlined_call_operand.vmem [shape: f32[8,16], index: 9, kind: input, shape index: {}]
  %s10 = inlined_call_operand.hbm [shape: f32[8,16], index: 10, kind: input, shape index: {}]
  %s11 = inlined_call_operand.vmem [shape: f32[1,16], index: 11, kind: input, shape index: {}]
  %s12 = inlined_call_operand.vmem [shape: f32[16,16], index: 12, kind: input, shape index: {}]
  %s13 = inlined_call_operand.vmem [shape: f32[16,16], index: 13, kind: input, shape index: {}]
  %s14 = inlined_call_operand.vmem [shape: f32[1,16], index: 14, kind: input, shape index: {}]
  %s15 = inlined_call_operand.hbm [shape: f32[8,16], index: 15, kind: input, shape index: {}]
  %s16 = inlined_call_operand.vmem [shape: f32[1,16], index: 16, kind: input, shape index: {}]
  %s17 = inlined_call_operand.vmem [shape: f32[16,16], index: 17, kind: input, shape index: {}]
  %s18 = inlined_call_operand.vmem [shape: f32[1,16], index: 18, kind: input, shape index: {}]
  %s19 = inlined_call_operand.vmem [shape: f32[16,8], index: 19, kind: input, shape index: {}]
  %s20 = inlined_call_operand.vmem [shape: f32[1,8], index: 20, kind: input, shape index: {}]
  %s21 = inlined_call_operand.vmem [shape: f32[8,1], index: 21, kind: input, shape index: {}]
  %s22 = inlined_call_operand.<no memory space> [shape: f32[1,1], index: 22, kind: input, shape index: {}]
  %s23 = inlined_call_operand.hbm [shape: f32[2,128], index: 23, kind: output, shape index: {}]
  %s24 = sld [smem:[#allocation0]]
  $region134: #{tpu_custom_call.1} parent=0
    _
  %s26 = ssub.s32 1, %s24
  %s27 = scalar_select 0, %s26, %s24
  %v28 = vstv %s22
  %29 = vst [vmem:[#allocation2] sm:$0x1] %v28
  $region1: #{tpu_custom_call.1} parent=0
    #allocation3 [shape = 'u8[2048]{0}', space=vmem, size = 0x800, scoped, tag = 'input window, operand 1, single buffered']
    #allocation4 [shape = 's32[1]{0}', space=sflag, size = 0x4, scoped, tag = 'scoped memory for tpu_custom_call.1']
    #allocation5 [shape = 's32[1]{0}', space=sflag, size = 0x4, scoped, tag = 'scoped memory for tpu_custom_call.1']
    #allocation6 [shape = 'u8[2048]{0}', space=vmem, size = 0x800, scoped, tag = 'input window, operand 2, single buffered']
    #allocation7 [shape = 's32[1]{0}', space=sflag, size = 0x4, scoped, tag = 'scoped memory for tpu_custom_call.1']
    #allocation8 [shape = 'u8[4096]{0}', space=vmem, size = 0x1000, scoped, tag = 'input window, operand 5, single buffered']
    #allocation9 [shape = 'u8[512]{0}', space=vmem, size = 0x400, scoped, tag = 'input window, operand 6, single buffered']
    #allocation10 [shape = 's32[1]{0}', space=sflag, size = 0x4, scoped, tag = 'scoped memory for tpu_custom_call.1']
    #allocation11 [shape = 'u8[2048]{0}', space=vmem, size = 0x800, scoped, tag = 'input window, operand 7, single buffered']
    #allocation12 [shape = 'u8[512]{0}', space=vmem, size = 0x400, scoped, tag = 'input window, operand 8, single buffered']
    #allocation13 [shape = 's32[1]{0}', space=sflag, size = 0x4, scoped, tag = 'scoped memory for tpu_custom_call.1']
    #allocation14 [shape = 'u8[4096]{0}', space=vmem, size = 0x1000, scoped, tag = 'input window, operand 10, single buffered']
    #allocation15 [shape = 'u8[4096]{0}', space=vmem, size = 0x1000, scoped, tag = 'input window, operand 15, single buffered']
    #allocation16 [shape = 's32[1]{0}', space=sflag, size = 0x4, scoped, tag = 'scoped memory for tpu_custom_call.1']
    #allocation17 [shape = 'u8[1024]{0}', space=vmem, size = 0x400, scoped, tag = 'output window, operand 0, single buffered']
    %30 = vsyncpa [#allocation4], 0
    %31 = vsyncpa [#allocation7], 0
    %32 = vsyncpa [#allocation10], 0
    %33 = vsyncpa [#allocation13], 0
    %34 = vsyncpa [#allocation16], 0
    %35 = vsyncpa [#allocation5], 0
    // Predicated region
    $region2: #{tpu_custom_call.1} parent=1 // pred_check
      _
    $region3: #{tpu_custom_call.1} parent=1 // pred_check_branch
      %37 = sbr.rel (0) target = $region5
    $region4: #{tpu_custom_call.1} parent=1 // pred_region
      _
    $region5: #{tpu_custom_call.1} parent=1 // pred_fallthru
      _
    // Predicated region
    $region6: #{tpu_custom_call.1} parent=1 // pred_check
      _
    $region7: #{tpu_custom_call.1} parent=1 // pred_check_branch
      %39 = sbr.rel (0) target = $region9
    $region8: #{tpu_custom_call.1} parent=1 // pred_region
      %41 = vsyncadd [#allocation4], 0
      %s43 = sshll.u32 %s1, 4
      %s44 = int_to_ptr.hbm [resolvable:$true] %s43
      %s45 = sshll.u32 [#allocation3], 4
      %s46 = int_to_ptr.vmem [resolvable:$true] %s45
      %48 = dma.hbm_to_vmem [thread:$0]  %s44, 64, %s46, [#allocation4]
    $region9: #{tpu_custom_call.1} parent=1 // pred_fallthru
      _
    // Predicated region
    $region10: #{tpu_custom_call.1} parent=1 // pred_check
      _
    $region11: #{tpu_custom_call.1} parent=1 // pred_check_branch
      %50 = sbr.rel (0) target = $region13
    $region12: #{tpu_custom_call.1} parent=1 // pred_region
      %52 = vsyncadd [#allocation7], 0
      %s54 = sshll.u32 %s2, 4
      %s55 = int_to_ptr.hbm [resolvable:$true] %s54
      %s56 = sshll.u32 [#allocation6], 4
      %s57 = int_to_ptr.vmem [resolvable:$true] %s56
      %59 = dma.hbm_to_vmem [thread:$0]  %s55, 64, %s57, [#allocation7]
    $region13: #{tpu_custom_call.1} parent=1 // pred_fallthru
      _
    // Predicated region
    $region14: #{tpu_custom_call.1} parent=1 // pred_check
      _
    $region15: #{tpu_custom_call.1} parent=1 // pred_check_branch
      %61 = sbr.rel (0) target = $region17
    $region16: #{tpu_custom_call.1} parent=1 // pred_region
      _
    $region17: #{tpu_custom_call.1} parent=1 // pred_fallthru
      _
    // Predicated region
    $region18: #{tpu_custom_call.1} parent=1 // pred_check
      _
    $region19: #{tpu_custom_call.1} parent=1 // pred_check_branch
      %63 = sbr.rel (0) target = $region21
    $region20: #{tpu_custom_call.1} parent=1 // pred_region
      _
    $region21: #{tpu_custom_call.1} parent=1 // pred_fallthru
      _
    // Predicated region
    $region22: #{tpu_custom_call.1} parent=1 // pred_check
      _
    $region23: #{tpu_custom_call.1} parent=1 // pred_check_branch
      %65 = sbr.rel (0) target = $region25
    $region24: #{tpu_custom_call.1} parent=1 // pred_region
      %67 = vsyncadd [#allocation7], 0
      %s69 = sshll.u32 %s5, 4
      %s70 = int_to_ptr.hbm [resolvable:$true] %s69
      %s71 = sshll.u32 [#allocation8], 4
      %s72 = int_to_ptr.vmem [resolvable:$true] %s71
      %74 = dma.hbm_to_vmem [thread:$0]  %s70, 128, %s72, [#allocation7]
    $region25: #{tpu_custom_call.1} parent=1 // pred_fallthru
      _
    // Predicated region
    $region26: #{tpu_custom_call.1} parent=1 // pred_check
      _
    $region27: #{tpu_custom_call.1} parent=1 // pred_check_branch
      %76 = sbr.rel (0) target = $region29
    $region28: #{tpu_custom_call.1} parent=1 // pred_region
      %78 = vsyncadd [#allocation10], 0
      %s80 = sshll.u32 %s6, 4
      %s81 = int_to_ptr.hbm [resolvable:$true] %s80
      %s82 = sshll.u32 [#allocation9], 4
      %s83 = int_to_ptr.vmem [resolvable:$true] %s82
      %85 = dma.hbm_to_vmem [thread:$0]  %s81, 16, %s83, [#allocation10]
    $region29: #{tpu_custom_call.1} parent=1 // pred_fallthru
      _
    // Predicated region
    $region30: #{tpu_custom_call.1} parent=1 // pred_check
      _
    $region31: #{tpu_custom_call.1} parent=1 // pred_check_branch
      %87 = sbr.rel (0) target = $region33
    $region32: #{tpu_custom_call.1} parent=1 // pred_region
      %89 = vsyncadd [#allocation10], 0
      %s91 = sshll.u32 %s7, 4
      %s92 = int_to_ptr.hbm [resolvable:$true] %s91
      %s93 = sshll.u32 [#allocation11], 4
      %s94 = int_to_ptr.vmem [resolvable:$true] %s93
      %96 = dma.hbm_to_vmem [thread:$0]  %s92, 64, %s94, [#allocation10]
    $region33: #{tpu_custom_call.1} parent=1 // pred_fallthru
      _
    // Predicated region
    $region34: #{tpu_custom_call.1} parent=1 // pred_check
      _
    $region35: #{tpu_custom_call.1} parent=1 // pred_check_branch
      %98 = sbr.rel (0) target = $region37
    $region36: #{tpu_custom_call.1} parent=1 // pred_region
      %100 = vsyncadd [#allocation13], 0
      %s102 = sshll.u32 %s8, 4
      %s103 = int_to_ptr.hbm [resolvable:$true] %s102
      %s104 = sshll.u32 [#allocation12], 4
      %s105 = int_to_ptr.vmem [resolvable:$true] %s104
      %107 = dma.hbm_to_vmem [thread:$0]  %s103, 16, %s105, [#allocation13]
    $region37: #{tpu_custom_call.1} parent=1 // pred_fallthru
      _
    // Predicated region
    $region38: #{tpu_custom_call.1} parent=1 // pred_check
      _
    $region39: #{tpu_custom_call.1} parent=1 // pred_check_branch
      %109 = sbr.rel (0) target = $region41
    $region40: #{tpu_custom_call.1} parent=1 // pred_region
      _
    $region41: #{tpu_custom_call.1} parent=1 // pred_fallthru
      _
    // Predicated region
    $region42: #{tpu_custom_call.1} parent=1 // pred_check
      _
    $region43: #{tpu_custom_call.1} parent=1 // pred_check_branch
      %111 = sbr.rel (0) target = $region45
    $region44: #{tpu_custom_call.1} parent=1 // pred_region
      %113 = vsyncadd [#allocation13], 0
      %s115 = sshll.u32 %s10, 4
      %s116 = int_to_ptr.hbm [resolvable:$true] %s115
      %s117 = sshll.u32 [#allocation14], 4
      %s118 = int_to_ptr.vmem [resolvable:$true] %s117
      %120 = dma.hbm_to_vmem [thread:$0]  %s116, 128, %s118, [#allocation13]
    $region45: #{tpu_custom_call.1} parent=1 // pred_fallthru
      _
    // Predicated region
    $region46: #{tpu_custom_call.1} parent=1 // pred_check
      _
    $region47: #{tpu_custom_call.1} parent=1 // pred_check_branch
      %122 = sbr.rel (0) target = $region49
    $region48: #{tpu_custom_call.1} parent=1 // pred_region
      _
    $region49: #{tpu_custom_call.1} parent=1 // pred_fallthru
      _
    // Predicated region
    $region50: #{tpu_custom_call.1} parent=1 // pred_check
      _
    $region51: #{tpu_custom_call.1} parent=1 // pred_check_branch
      %124 = sbr.rel (0) target = $region53
    $region52: #{tpu_custom_call.1} parent=1 // pred_region
      _
    $region53: #{tpu_custom_call.1} parent=1 // pred_fallthru
      _
    // Predicated region
    $region54: #{tpu_custom_call.1} parent=1 // pred_check
      _
    $region55: #{tpu_custom_call.1} parent=1 // pred_check_branch
      %126 = sbr.rel (0) target = $region57
    $region56: #{tpu_custom_call.1} parent=1 // pred_region
      _
    $region57: #{tpu_custom_call.1} parent=1 // pred_fallthru
      _
    // Predicated region
    $region58: #{tpu_custom_call.1} parent=1 // pred_check
      _
    $region59: #{tpu_custom_call.1} parent=1 // pred_check_branch
      %128 = sbr.rel (0) target = $region61
    $region60: #{tpu_custom_call.1} parent=1 // pred_region
      _
    $region61: #{tpu_custom_call.1} parent=1 // pred_fallthru
      _
    // Predicated region
    $region62: #{tpu_custom_call.1} parent=1 // pred_check
      _
    $region63: #{tpu_custom_call.1} parent=1 // pred_check_branch
      %130 = sbr.rel (0) target = $region65
    $region64: #{tpu_custom_call.1} parent=1 // pred_region
      %132 = vsyncadd [#allocation16], 0
      %s134 = sshll.u32 %s15, 4
      %s135 = int_to_ptr.hbm [resolvable:$true] %s134
      %s136 = sshll.u32 [#allocation15], 4
      %s137 = int_to_ptr.vmem [resolvable:$true] %s136
      %139 = dma.hbm_to_vmem [thread:$0]  %s135, 128, %s137, [#allocation16]
    $region65: #{tpu_custom_call.1} parent=1 // pred_fallthru
      _
    // Predicated region
    $region66: #{tpu_custom_call.1} parent=1 // pred_check
      _
    $region67: #{tpu_custom_call.1} parent=1 // pred_check_branch
      %141 = sbr.rel (0) target = $region69
    $region68: #{tpu_custom_call.1} parent=1 // pred_region
      _
    $region69: #{tpu_custom_call.1} parent=1 // pred_fallthru
      _
    // Predicated region
    $region70: #{tpu_custom_call.1} parent=1 // pred_check
      _
    $region71: #{tpu_custom_call.1} parent=1 // pred_check_branch
      %143 = sbr.rel (0) target = $region73
    $region72: #{tpu_custom_call.1} parent=1 // pred_region
      _
    $region73: #{tpu_custom_call.1} parent=1 // pred_fallthru
      _
    // Predicated region
    $region74: #{tpu_custom_call.1} parent=1 // pred_check
      _
    $region75: #{tpu_custom_call.1} parent=1 // pred_check_branch
      %145 = sbr.rel (0) target = $region77
    $region76: #{tpu_custom_call.1} parent=1 // pred_region
      _
    $region77: #{tpu_custom_call.1} parent=1 // pred_fallthru
      _
    // Predicated region
    $region78: #{tpu_custom_call.1} parent=1 // pred_check
      _
    $region79: #{tpu_custom_call.1} parent=1 // pred_check_branch
      %147 = sbr.rel (0) target = $region81
    $region80: #{tpu_custom_call.1} parent=1 // pred_region
      _
    $region81: #{tpu_custom_call.1} parent=1 // pred_fallthru
      _
    // Predicated region
    $region82: #{tpu_custom_call.1} parent=1 // pred_check
      _
    $region83: #{tpu_custom_call.1} parent=1 // pred_check_branch
      %149 = sbr.rel (0) target = $region85
    $region84: #{tpu_custom_call.1} parent=1 // pred_region
      _
    $region85: #{tpu_custom_call.1} parent=1 // pred_fallthru
      _
    // Predicated region
    $region86: #{tpu_custom_call.1} parent=1 // pred_check
      _
    $region87: #{tpu_custom_call.1} parent=1 // pred_check_branch
      %151 = sbr.rel (0) target = $region89
    $region88: #{tpu_custom_call.1} parent=1 // pred_region
      _
    $region89: #{tpu_custom_call.1} parent=1 // pred_fallthru
      _
    // Predicated region
    $region90: #{tpu_custom_call.1} parent=1 // pred_check
      _
    $region91: #{tpu_custom_call.1} parent=1 // pred_check_branch
      %153 = sbr.rel (0) target = $region93
    $region92: #{tpu_custom_call.1} parent=1 // pred_region
      _
    $region93: #{tpu_custom_call.1} parent=1 // pred_fallthru
      _
    // Predicated region
    $region94: #{tpu_custom_call.1} parent=1 // pred_check
      _
    $region95: #{tpu_custom_call.1} parent=1 // pred_check_branch
      %155 = sbr.rel (0) target = $region97
    $region96: #{tpu_custom_call.1} parent=1 // pred_region
      %157 = dma.done [#allocation4], 64
    $region97: #{tpu_custom_call.1} parent=1 // pred_fallthru
      _
    // Predicated region
    $region98: #{tpu_custom_call.1} parent=1 // pred_check
      _
    $region99: #{tpu_custom_call.1} parent=1 // pred_check_branch
      %159 = sbr.rel (0) target = $region101
    $region100: #{tpu_custom_call.1} parent=1 // pred_region
      %161 = dma.done [#allocation7], 64
    $region101: #{tpu_custom_call.1} parent=1 // pred_fallthru
      _
    // Predicated region
    $region102: #{tpu_custom_call.1} parent=1 // pred_check
      _
    $region103: #{tpu_custom_call.1} parent=1 // pred_check_branch
      %163 = sbr.rel (0) target = $region105
    $region104: #{tpu_custom_call.1} parent=1 // pred_region
      %165 = dma.done [#allocation7], 128
    $region105: #{tpu_custom_call.1} parent=1 // pred_fallthru
      _
    // Predicated region
    $region106: #{tpu_custom_call.1} parent=1 // pred_check
      _
    $region107: #{tpu_custom_call.1} parent=1 // pred_check_branch
      %167 = sbr.rel (0) target = $region109
    $region108: #{tpu_custom_call.1} parent=1 // pred_region
      %169 = dma.done [#allocation10], 16
    $region109: #{tpu_custom_call.1} parent=1 // pred_fallthru
      _
    // Predicated region
    $region110: #{tpu_custom_call.1} parent=1 // pred_check
      _
    $region111: #{tpu_custom_call.1} parent=1 // pred_check_branch
      %171 = sbr.rel (0) target = $region113
    $region112: #{tpu_custom_call.1} parent=1 // pred_region
      %173 = dma.done [#allocation10], 64
    $region113: #{tpu_custom_call.1} parent=1 // pred_fallthru
      _
    // Predicated region
    $region114: #{tpu_custom_call.1} parent=1 // pred_check
      _
    $region115: #{tpu_custom_call.1} parent=1 // pred_check_branch
      %175 = sbr.rel (0) target = $region117
    $region116: #{tpu_custom_call.1} parent=1 // pred_region
      %177 = dma.done [#allocation13], 16
    $region117: #{tpu_custom_call.1} parent=1 // pred_fallthru
      _
    // Predicated region
    $region118: #{tpu_custom_call.1} parent=1 // pred_check
      _
    $region119: #{tpu_custom_call.1} parent=1 // pred_check_branch
      %179 = sbr.rel (0) target = $region121
    $region120: #{tpu_custom_call.1} parent=1 // pred_region
      %181 = dma.done [#allocation13], 128
    $region121: #{tpu_custom_call.1} parent=1 // pred_fallthru
      _
    // Predicated region
    $region122: #{tpu_custom_call.1} parent=1 // pred_check
      _
    $region123: #{tpu_custom_call.1} parent=1 // pred_check_branch
      %183 = sbr.rel (0) target = $region125
    $region124: #{tpu_custom_call.1} parent=1 // pred_region
      %185 = dma.done [#allocation16], 128
    $region125: #{tpu_custom_call.1} parent=1 // pred_fallthru
      _
    %v186 = vld [vmem:[%s0] sm:$0x3]
    %v187 = vld [vmem:[%s0 + $0x2] sm:$0x3]
    %v188 = vld [vmem:[%s0 + $0x4] sm:$0x3]
    %v189 = vld [vmem:[%s0 + $0x6] sm:$0x3]
    %v190 = vld [vmem:[%s0 + $0x8] sm:$0x3]
    %v191 = vld [vmem:[%s0 + $0xa] sm:$0x3]
    %v192 = vld [vmem:[%s0 + $0xc] sm:$0x3]
    %v193 = vld [vmem:[%s0 + $0xe] sm:$0x3]
    %v194 = vld [vmem:[%s0 + $0x10] sm:$0x3]
    %v195 = vld [vmem:[%s0 + $0x12] sm:$0x3]
    %v196 = vld [vmem:[%s0 + $0x14] sm:$0x3]
    %v197 = vld [vmem:[%s0 + $0x16] sm:$0x3]
    %v198 = vld [vmem:[%s0 + $0x18] sm:$0x3]
    %v199 = vld [vmem:[%s0 + $0x1a] sm:$0x3]
    %v200 = vld [vmem:[%s0 + $0x1c] sm:$0x3]
    %v201 = vld [vmem:[%s0 + $0x1e] sm:$0x3]
    %v202 = vlaneseq
    %v203 = vshrl.u32 %v202, 7
    %v204 = vadd.s32 %v203, 8
    %v205 = vadd.s32 %v203, 16
    %v206 = vadd.s32 %v203, 24
    %vm207 = vcmp.ge.s32.totalorder %v203, 2
    %vm208 = vcmp.ge.s32.totalorder %v204, 2
    %vm209 = vcmp.ge.s32.totalorder %v205, 2
    %vm210 = vcmp.ge.s32.totalorder %v206, 2
    %227 = vst [vmem:[#allocation1] ss:$4 sm:$0xff] %v186
    %s228 = scalar_lea.vmem [#allocation1], 1
    %229 = vst [vmem:[%s228] ss:$4 sm:$0xff] %v187
    %s230 = scalar_lea.vmem [#allocation1], 2
    %231 = vst [vmem:[%s230] ss:$4 sm:$0xff] %v188
    %s232 = scalar_lea.vmem [#allocation1], 3
    %233 = vst [vmem:[%s232] ss:$4 sm:$0xff] %v189
    %s234 = scalar_lea.vmem [#allocation1], 32
    %235 = vst [vmem:[%s234] ss:$4 sm:$0xff] %v190
    %s236 = scalar_lea.vmem [#allocation1], 33
    %237 = vst [vmem:[%s236] ss:$4 sm:$0xff] %v191
    %s238 = scalar_lea.vmem [#allocation1], 34
    %239 = vst [vmem:[%s238] ss:$4 sm:$0xff] %v192
    %s240 = scalar_lea.vmem [#allocation1], 35
    %241 = vst [vmem:[%s240] ss:$4 sm:$0xff] %v193
    %v242 = vld.sshfl [vmem:[#allocation1] sm:$0xff pattern:$0x73625140]
    %v243 = vld.sshfl [vmem:[#allocation1 + $0x20] sm:$0xff pattern:$0x73625140]
    %244 = vst [vmem:[#allocation1] ss:$4 sm:$0xff] %v194
    %245 = vst [vmem:[%s228] ss:$4 sm:$0xff] %v195
    %246 = vst [vmem:[%s230] ss:$4 sm:$0xff] %v196
    %247 = vst [vmem:[%s232] ss:$4 sm:$0xff] %v197
    %248 = vst [vmem:[%s234] ss:$4 sm:$0xff] %v198
    %249 = vst [vmem:[%s236] ss:$4 sm:$0xff] %v199
    %250 = vst [vmem:[%s238] ss:$4 sm:$0xff] %v200
    %251 = vst [vmem:[%s240] ss:$4 sm:$0xff] %v201
    %v252 = vld.sshfl [vmem:[#allocation1] sm:$0xff pattern:$0x73625140]
    %v253 = vld.sshfl [vmem:[#allocation1 + $0x20] sm:$0xff pattern:$0x73625140]
    %v258 = vrot.slane %v242, 6
    %v259 = vrot.slane %v243, 6
    %v260 = vrot.slane %v252, 6
    %v261 = vrot.slane %v253, 6
    %vm262 = vcmp.lt.s32.totalorder %v203, 2
    %v263 = vsel %vm262, %v260, %v261
    %v264 = vsel %vm262, %v259, %v260
    %v265 = vsel %vm262, %v258, %v259
    %v266 = vsel %vm262, %v261, %v258
    %v267 = vsel %vm207, 1, 0
    %v268 = vsel %vm208, 1, 0
    %v269 = vsel %vm209, 1, 0
    %v270 = vsel %vm210, 1, 0
    %vm271 = vcmp.eq.s32.totalorder %v267, 1
    %vm272 = vcmp.eq.s32.totalorder %v268, 1
    %vm273 = vcmp.eq.s32.totalorder %v269, 1
    %vm274 = vcmp.eq.s32.totalorder %v270, 1
    %v275 = vsel %vm271, %v266, 0.0
    %v276 = vsel %vm272, %v265, 0.0
    %v277 = vsel %vm273, %v264, 0.0
    %v278 = vsel %vm274, %v263, 0.0
    %v279 = vld [vmem:[#allocation3] sm:$0xf]
    %v280 = vld [vmem:[#allocation6] sm:$0xf]
    %281 = vst [vmem:[#allocation1] ss:$4 sm:$0xff] %v186
    %s282 = scalar_lea.vmem [#allocation1], 1
    %283 = vst [vmem:[%s282] ss:$4 sm:$0xff] %v187
    %s284 = scalar_lea.vmem [#allocation1], 2
    %285 = vst [vmem:[%s284] ss:$4 sm:$0xff] %v188
    %s286 = scalar_lea.vmem [#allocation1], 3
    %287 = vst [vmem:[%s286] ss:$4 sm:$0xff] %v189
    %s288 = scalar_lea.vmem [#allocation1], 32
    %289 = vst [vmem:[%s288] ss:$4 sm:$0xff] %v190
    %s290 = scalar_lea.vmem [#allocation1], 33
    %291 = vst [vmem:[%s290] ss:$4 sm:$0xff] %v191
    %s292 = scalar_lea.vmem [#allocation1], 34
    %293 = vst [vmem:[%s292] ss:$4 sm:$0xff] %v192
    %s294 = scalar_lea.vmem [#allocation1], 35
    %295 = vst [vmem:[%s294] ss:$4 sm:$0xff] %v193
    %v296 = vld.sshfl [vmem:[#allocation1] sm:$0xff pattern:$0x73625140]
    %v297 = vld.sshfl [vmem:[#allocation1 + $0x20] sm:$0xff pattern:$0x73625140]
    %298 = vst [vmem:[#allocation1] ss:$4 sm:$0xff] %v194
    %299 = vst [vmem:[%s282] ss:$4 sm:$0xff] %v195
    %300 = vst [vmem:[%s284] ss:$4 sm:$0xff] %v196
    %301 = vst [vmem:[%s286] ss:$4 sm:$0xff] %v197
    %302 = vst [vmem:[%s288] ss:$4 sm:$0xff] %v198
    %303 = vst [vmem:[%s290] ss:$4 sm:$0xff] %v199
    %304 = vst [vmem:[%s292] ss:$4 sm:$0xff] %v200
    %305 = vst [vmem:[%s294] ss:$4 sm:$0xff] %v201
    %v306 = vld.sshfl [vmem:[#allocation1] sm:$0xff pattern:$0x73625140]
    %v307 = vld.sshfl [vmem:[#allocation1 + $0x20] sm:$0xff pattern:$0x73625140]
    %vm308 = vcmask 31744
    %v309 = vsel %vm308, %v296, 0
    %v311 = vsel %vm308, %v297, 0
    %v313 = vsel %vm308, %v306, 0
    %v315 = vsel %vm308, %v307, 0
    %vm317 = vcmask 1043456
    %v319 = vsel %vm317, %v280, 0
    %321 = vmatpush.msra.mxu0 0.0
    %322 = vmatpush.msra.mxu0 0.0
    %323 = vmatpush.msra.mxu0 0.0
    %324 = vmatpush.msra.mxu0 0.0
    %325 = vmatpush.msra.mxu0 0.0
    %326 = vmatpush.msra.mxu0 0.0
    %327 = vmatpush.msra.mxu0 0.0
    %328 = vmatpush.msra.mxu0 0.0
    %329 = vmatpush.msra.mxu0 0.0
    %330 = vmatpush.msra.mxu0 0.0
    %331 = vmatpush.msra.mxu0 0.0
    %332 = vmatpush.msra.mxu0 0.0
    %333 = vmatpush.msra.mxu0 0.0
    %334 = vmatpush.msra.mxu0 0.0
    %335 = vmatpush.msra.mxu0 0.0
    %336 = vmatpush.msra.mxu0 %v319
    %337 = vmatmul.f32.gmra.mxu0 %v309
    %v338 = vpop.f32.mrf.mxu0
    %v339 = vadd.f32 0.0, %v338
    %340 = vmatmul.f32.gmra.mxu0 %v311
    %v341 = vpop.f32.mrf.mxu0
    %v342 = vadd.f32 0.0, %v341
    %343 = vmatmul.f32.gmra.mxu0 %v313
    %v344 = vpop.f32.mrf.mxu0
    %v345 = vadd.f32 0.0, %v344
    %346 = vmatmul.f32.gmra.mxu0 %v315
    %v347 = vpop.f32.mrf.mxu0
    %v348 = vadd.f32 0.0, %v347
    %349 = vdwg.mxu0
    %v351 = vsel %vm308, %v275, 0
    %v354 = vsel %vm308, %v276, 0
    %v357 = vsel %vm308, %v277, 0
    %v360 = vsel %vm308, %v278, 0
    %v363 = vsel %vm317, %v279, 0
    %365 = vmatpush.msra.mxu0 0.0
    %366 = vmatpush.msra.mxu0 0.0
    %367 = vmatpush.msra.mxu0 0.0
    %368 = vmatpush.msra.mxu0 0.0
    %369 = vmatpush.msra.mxu0 0.0
    %370 = vmatpush.msra.mxu0 0.0
    %371 = vmatpush.msra.mxu0 0.0
    %372 = vmatpush.msra.mxu0 0.0
    %373 = vmatpush.msra.mxu0 0.0
    %374 = vmatpush.msra.mxu0 0.0
    %375 = vmatpush.msra.mxu0 0.0
    %376 = vmatpush.msra.mxu0 0.0
    %377 = vmatpush.msra.mxu0 0.0
    %378 = vmatpush.msra.mxu0 0.0
    %379 = vmatpush.msra.mxu0 0.0
    %380 = vmatpush.msra.mxu0 %v363
    %381 = vmatmul.f32.gmra.mxu0 %v351
    %v382 = vpop.f32.mrf.mxu0
    %v383 = vadd.f32 %v339, %v382
    %384 = vmatmul.f32.gmra.mxu0 %v354
    %v385 = vpop.f32.mrf.mxu0
    %v386 = vadd.f32 %v342, %v385
    %387 = vmatmul.f32.gmra.mxu0 %v357
    %v388 = vpop.f32.mrf.mxu0
    %v389 = vadd.f32 %v345, %v388
    %390 = vmatmul.f32.gmra.mxu0 %v360
    %v391 = vpop.f32.mrf.mxu0
    %v392 = vadd.f32 %v348, %v391
    %393 = vdwg.mxu0
    %v394 = vld [vmem:[%s3] sm:$0x1]
    %v396 = vperm.slane %v394, 0
    %v398 = vadd.f32 %v383, %v396
    %v399 = vadd.f32 %v386, %v396
    %v400 = vadd.f32 %v389, %v396
    %v401 = vadd.f32 %v392, %v396
    %v402 = vmax.f32 %v398, 0.0
    %v403 = vmax.f32 %v399, 0.0
    %v404 = vmax.f32 %v400, 0.0
    %v405 = vmax.f32 %v401, 0.0
    %v406 = vrot.slane %v402, 6
    %v407 = vrot.slane %v403, 6
    %v408 = vrot.slane %v404, 6
    %v409 = vrot.slane %v405, 6
    %v410 = vsel %vm262, %v408, %v409
    %v411 = vsel %vm262, %v407, %v408
    %v412 = vsel %vm262, %v406, %v407
    %v413 = vsel %vm262, %v409, %v406
    %v414 = vsel %vm271, %v413, 0.0
    %v415 = vsel %vm272, %v412, 0.0
    %v416 = vsel %vm273, %v411, 0.0
    %v417 = vsel %vm274, %v410, 0.0
    %v418 = vld [vmem:[%s4] sm:$0xff]
    %v419 = vld [vmem:[#allocation8] sm:$0xff]
    %vm420 = vcmask 64512
    %v422 = vsel %vm420, %v402, 0
    %v425 = vsel %vm420, %v403, 0
    %v428 = vsel %vm420, %v404, 0
    %v431 = vsel %vm420, %v405, 0
    %433 = vmatpush.msra.mxu0 0.0
    %434 = vmatpush.msra.mxu0 0.0
    %435 = vmatpush.msra.mxu0 0.0
    %436 = vmatpush.msra.mxu0 0.0
    %437 = vmatpush.msra.mxu0 0.0
    %438 = vmatpush.msra.mxu0 0.0
    %439 = vmatpush.msra.mxu0 0.0
    %440 = vmatpush.msra.mxu0 0.0
    %441 = vmatpush.msra.mxu0 0.0
    %442 = vmatpush.msra.mxu0 0.0
    %443 = vmatpush.msra.mxu0 0.0
    %444 = vmatpush.msra.mxu0 0.0
    %445 = vmatpush.msra.mxu0 0.0
    %446 = vmatpush.msra.mxu0 0.0
    %447 = vmatpush.msra.mxu0 0.0
    %448 = vmatpush.msra.mxu0 %v419
    %449 = vmatmul.f32.gmra.mxu0 %v422
    %v450 = vpop.f32.mrf.mxu0
    %v451 = vadd.f32 0.0, %v450
    %452 = vmatmul.f32.gmra.mxu0 %v425
    %v453 = vpop.f32.mrf.mxu0
    %v454 = vadd.f32 0.0, %v453
    %455 = vmatmul.f32.gmra.mxu0 %v428
    %v456 = vpop.f32.mrf.mxu0
    %v457 = vadd.f32 0.0, %v456
    %458 = vmatmul.f32.gmra.mxu0 %v431
    %v459 = vpop.f32.mrf.mxu0
    %v460 = vadd.f32 0.0, %v459
    %461 = vdwg.mxu0
    %v463 = vsel %vm420, %v414, 0
    %v466 = vsel %vm420, %v415, 0
    %v469 = vsel %vm420, %v416, 0
    %v472 = vsel %vm420, %v417, 0
    %474 = vmatpush.msra.mxu0 0.0
    %475 = vmatpush.msra.mxu0 0.0
    %476 = vmatpush.msra.mxu0 0.0
    %477 = vmatpush.msra.mxu0 0.0
    %478 = vmatpush.msra.mxu0 0.0
    %479 = vmatpush.msra.mxu0 0.0
    %480 = vmatpush.msra.mxu0 0.0
    %481 = vmatpush.msra.mxu0 0.0
    %482 = vmatpush.msra.mxu0 0.0
    %483 = vmatpush.msra.mxu0 0.0
    %484 = vmatpush.msra.mxu0 0.0
    %485 = vmatpush.msra.mxu0 0.0
    %486 = vmatpush.msra.mxu0 0.0
    %487 = vmatpush.msra.mxu0 0.0
    %488 = vmatpush.msra.mxu0 0.0
    %489 = vmatpush.msra.mxu0 %v418
    %490 = vmatmul.f32.gmra.mxu0 %v463
    %v491 = vpop.f32.mrf.mxu0
    %v492 = vadd.f32 %v451, %v491
    %493 = vmatmul.f32.gmra.mxu0 %v466
    %v494 = vpop.f32.mrf.mxu0
    %v495 = vadd.f32 %v454, %v494
    %496 = vmatmul.f32.gmra.mxu0 %v469
    %v497 = vpop.f32.mrf.mxu0
    %v498 = vadd.f32 %v457, %v497
    %499 = vmatmul.f32.gmra.mxu0 %v472
    %v500 = vpop.f32.mrf.mxu0
    %v501 = vadd.f32 %v460, %v500
    %502 = vdwg.mxu0
    %v503 = vld [vmem:[#allocation9] sm:$0x1]
    %v505 = vperm.slane %v503, 0
    %v507 = vadd.f32 %v492, %v505
    %v508 = vadd.f32 %v495, %v505
    %v509 = vadd.f32 %v498, %v505
    %v510 = vadd.f32 %v501, %v505
    %v511 = vmax.f32 %v507, 0.0
    %v512 = vmax.f32 %v508, 0.0
    %v513 = vmax.f32 %v509, 0.0
    %v514 = vmax.f32 %v510, 0.0
    %v515 = vld [vmem:[#allocation11] sm:$0xf]
    %v516 = vld [vmem:[#allocation12] sm:$0x1]
    %v518 = vperm.slane %v516, 0
    %520 = vst [vmem:[#allocation1] ss:$4 sm:$0xff] %v186
    %s521 = scalar_lea.vmem [#allocation1], 1
    %522 = vst [vmem:[%s521] ss:$4 sm:$0xff] %v187
    %s523 = scalar_lea.vmem [#allocation1], 2
    %524 = vst [vmem:[%s523] ss:$4 sm:$0xff] %v188
    %s525 = scalar_lea.vmem [#allocation1], 3
    %526 = vst [vmem:[%s525] ss:$4 sm:$0xff] %v189
    %s527 = scalar_lea.vmem [#allocation1], 32
    %528 = vst [vmem:[%s527] ss:$4 sm:$0xff] %v190
    %s529 = scalar_lea.vmem [#allocation1], 33
    %530 = vst [vmem:[%s529] ss:$4 sm:$0xff] %v191
    %s531 = scalar_lea.vmem [#allocation1], 34
    %532 = vst [vmem:[%s531] ss:$4 sm:$0xff] %v192
    %s533 = scalar_lea.vmem [#allocation1], 35
    %534 = vst [vmem:[%s533] ss:$4 sm:$0xff] %v193
    %v535 = vld.sshfl [vmem:[#allocation1] sm:$0xff pattern:$0x73625140]
    %v536 = vld.sshfl [vmem:[#allocation1 + $0x20] sm:$0xff pattern:$0x73625140]
    %537 = vst [vmem:[#allocation1] ss:$4 sm:$0xff] %v194
    %538 = vst [vmem:[%s521] ss:$4 sm:$0xff] %v195
    %539 = vst [vmem:[%s523] ss:$4 sm:$0xff] %v196
    %540 = vst [vmem:[%s525] ss:$4 sm:$0xff] %v197
    %541 = vst [vmem:[%s527] ss:$4 sm:$0xff] %v198
    %542 = vst [vmem:[%s529] ss:$4 sm:$0xff] %v199
    %543 = vst [vmem:[%s531] ss:$4 sm:$0xff] %v200
    %544 = vst [vmem:[%s533] ss:$4 sm:$0xff] %v201
    %v545 = vld.sshfl [vmem:[#allocation1] sm:$0xff pattern:$0x73625140]
    %v546 = vld.sshfl [vmem:[#allocation1 + $0x20] sm:$0xff pattern:$0x73625140]
    %v547 = vsel %vm308, %v535, 0
    %v549 = vsel %vm308, %v536, 0
    %v551 = vsel %vm308, %v545, 0
    %v553 = vsel %vm308, %v546, 0
    %v556 = vsel %vm317, %v515, 0
    %558 = vmatpush.msra.mxu0 0.0
    %559 = vmatpush.msra.mxu0 0.0
    %560 = vmatpush.msra.mxu0 0.0
    %561 = vmatpush.msra.mxu0 0.0
    %562 = vmatpush.msra.mxu0 0.0
    %563 = vmatpush.msra.mxu0 0.0
    %564 = vmatpush.msra.mxu0 0.0
    %565 = vmatpush.msra.mxu0 0.0
    %566 = vmatpush.msra.mxu0 0.0
    %567 = vmatpush.msra.mxu0 0.0
    %568 = vmatpush.msra.mxu0 0.0
    %569 = vmatpush.msra.mxu0 0.0
    %570 = vmatpush.msra.mxu0 0.0
    %571 = vmatpush.msra.mxu0 0.0
    %572 = vmatpush.msra.mxu0 0.0
    %573 = vmatpush.msra.mxu0 %v556
    %574 = vmatmul.f32.gmra.mxu0 %v547
    %v575 = vpop.f32.mrf.mxu0
    %v576 = vadd.f32 %v518, %v575
    %577 = vmatmul.f32.gmra.mxu0 %v549
    %v578 = vpop.f32.mrf.mxu0
    %v579 = vadd.f32 %v518, %v578
    %580 = vmatmul.f32.gmra.mxu0 %v551
    %v581 = vpop.f32.mrf.mxu0
    %v582 = vadd.f32 %v518, %v581
    %583 = vmatmul.f32.gmra.mxu0 %v553
    %v584 = vpop.f32.mrf.mxu0
    %v585 = vadd.f32 %v518, %v584
    %586 = vdwg.mxu0
    %v587 = vadd.f32 %v511, %v576
    %v588 = vadd.f32 %v512, %v579
    %v589 = vadd.f32 %v513, %v582
    %v590 = vadd.f32 %v514, %v585
    %v591 = vmax.f32 %v587, 0.0
    %v592 = vmax.f32 %v588, 0.0
    %v593 = vmax.f32 %v589, 0.0
    %v594 = vmax.f32 %v590, 0.0
    %vm595 = vcmp.ge.s32.totalorder %v203, 4
    %vm596 = vcmp.ge.s32.totalorder %v204, 4
    %vm597 = vcmp.ge.s32.totalorder %v205, 4
    %vm598 = vcmp.ge.s32.totalorder %v206, 4
    %v599 = vrot.slane %v591, 4
    %v600 = vrot.slane %v592, 4
    %v601 = vrot.slane %v593, 4
    %v602 = vrot.slane %v594, 4
    %vm603 = vcmp.lt.s32.totalorder %v203, 4
    %v604 = vsel %vm603, %v601, %v602
    %v605 = vsel %vm603, %v600, %v601
    %v606 = vsel %vm603, %v599, %v600
    %v607 = vsel %vm603, %v602, %v599
    %v608 = vsel %vm595, 1, 0
    %v609 = vsel %vm596, 1, 0
    %v610 = vsel %vm597, 1, 0
    %v611 = vsel %vm598, 1, 0
    %vm612 = vcmp.eq.s32.totalorder %v608, 1
    %vm613 = vcmp.eq.s32.totalorder %v609, 1
    %vm614 = vcmp.eq.s32.totalorder %v610, 1
    %vm615 = vcmp.eq.s32.totalorder %v611, 1
    %v616 = vsel %vm612, %v607, 0.0
    %v617 = vsel %vm613, %v606, 0.0
    %v618 = vsel %vm614, %v605, 0.0
    %v619 = vsel %vm615, %v604, 0.0
    %v620 = vld [vmem:[%s9] sm:$0xff]
    %v621 = vld [vmem:[#allocation14] sm:$0xff]
    %v623 = vsel %vm420, %v591, 0
    %v626 = vsel %vm420, %v592, 0
    %v629 = vsel %vm420, %v593, 0
    %v632 = vsel %vm420, %v594, 0
    %634 = vmatpush.msra.mxu0 0.0
    %635 = vmatpush.msra.mxu0 0.0
    %636 = vmatpush.msra.mxu0 0.0
    %637 = vmatpush.msra.mxu0 0.0
    %638 = vmatpush.msra.mxu0 0.0
    %639 = vmatpush.msra.mxu0 0.0
    %640 = vmatpush.msra.mxu0 0.0
    %641 = vmatpush.msra.mxu0 0.0
    %642 = vmatpush.msra.mxu0 0.0
    %643 = vmatpush.msra.mxu0 0.0
    %644 = vmatpush.msra.mxu0 0.0
    %645 = vmatpush.msra.mxu0 0.0
    %646 = vmatpush.msra.mxu0 0.0
    %647 = vmatpush.msra.mxu0 0.0
    %648 = vmatpush.msra.mxu0 0.0
    %649 = vmatpush.msra.mxu0 %v621
    %650 = vmatmul.f32.gmra.mxu0 %v623
    %v651 = vpop.f32.mrf.mxu0
    %v652 = vadd.f32 0.0, %v651
    %653 = vmatmul.f32.gmra.mxu0 %v626
    %v654 = vpop.f32.mrf.mxu0
    %v655 = vadd.f32 0.0, %v654
    %656 = vmatmul.f32.gmra.mxu0 %v629
    %v657 = vpop.f32.mrf.mxu0
    %v658 = vadd.f32 0.0, %v657
    %659 = vmatmul.f32.gmra.mxu0 %v632
    %v660 = vpop.f32.mrf.mxu0
    %v661 = vadd.f32 0.0, %v660
    %662 = vdwg.mxu0
    %v664 = vsel %vm420, %v616, 0
    %v667 = vsel %vm420, %v617, 0
    %v670 = vsel %vm420, %v618, 0
    %v673 = vsel %vm420, %v619, 0
    %675 = vmatpush.msra.mxu0 0.0
    %676 = vmatpush.msra.mxu0 0.0
    %677 = vmatpush.msra.mxu0 0.0
    %678 = vmatpush.msra.mxu0 0.0
    %679 = vmatpush.msra.mxu0 0.0
    %680 = vmatpush.msra.mxu0 0.0
    %681 = vmatpush.msra.mxu0 0.0
    %682 = vmatpush.msra.mxu0 0.0
    %683 = vmatpush.msra.mxu0 0.0
    %684 = vmatpush.msra.mxu0 0.0
    %685 = vmatpush.msra.mxu0 0.0
    %686 = vmatpush.msra.mxu0 0.0
    %687 = vmatpush.msra.mxu0 0.0
    %688 = vmatpush.msra.mxu0 0.0
    %689 = vmatpush.msra.mxu0 0.0
    %690 = vmatpush.msra.mxu0 %v620
    %691 = vmatmul.f32.gmra.mxu0 %v664
    %v692 = vpop.f32.mrf.mxu0
    %v693 = vadd.f32 %v652, %v692
    %694 = vmatmul.f32.gmra.mxu0 %v667
    %v695 = vpop.f32.mrf.mxu0
    %v696 = vadd.f32 %v655, %v695
    %697 = vmatmul.f32.gmra.mxu0 %v670
    %v698 = vpop.f32.mrf.mxu0
    %v699 = vadd.f32 %v658, %v698
    %700 = vmatmul.f32.gmra.mxu0 %v673
    %v701 = vpop.f32.mrf.mxu0
    %v702 = vadd.f32 %v661, %v701
    %703 = vdwg.mxu0
    %v704 = vld [vmem:[%s11] sm:$0x1]
    %v706 = vperm.slane %v704, 0
    %v708 = vadd.f32 %v693, %v706
    %v709 = vadd.f32 %v696, %v706
    %v710 = vadd.f32 %v699, %v706
    %v711 = vadd.f32 %v702, %v706
    %v712 = vmax.f32 %v708, 0.0
    %v713 = vmax.f32 %v709, 0.0
    %v714 = vmax.f32 %v710, 0.0
    %v715 = vmax.f32 %v711, 0.0
    %v716 = vrot.slane %v712, 4
    %v717 = vrot.slane %v713, 4
    %v718 = vrot.slane %v714, 4
    %v719 = vrot.slane %v715, 4
    %v720 = vsel %vm603, %v718, %v719
    %v721 = vsel %vm603, %v717, %v718
    %v722 = vsel %vm603, %v716, %v717
    %v723 = vsel %vm603, %v719, %v716
    %v724 = vsel %vm612, %v723, 0.0
    %v725 = vsel %vm613, %v722, 0.0
    %v726 = vsel %vm614, %v721, 0.0
    %v727 = vsel %vm615, %v720, 0.0
    %v728 = vld [vmem:[%s12] sm:$0xff]
    %v729 = vld [vmem:[%s12 + $0x8] sm:$0xff]
    %v730 = vld [vmem:[%s13] sm:$0xff]
    %v731 = vld [vmem:[%s13 + $0x8] sm:$0xff]
    %vm732 = vcmask 130048
    %v734 = vsel %vm732, %v712, 0
    %v737 = vsel %vm732, %v713, 0
    %v740 = vsel %vm732, %v714, 0
    %v743 = vsel %vm732, %v715, 0
    %745 = vmatpush.msra.mxu0 0.0
    %746 = vmatpush.msra.mxu0 0.0
    %747 = vmatpush.msra.mxu0 0.0
    %748 = vmatpush.msra.mxu0 0.0
    %749 = vmatpush.msra.mxu0 0.0
    %750 = vmatpush.msra.mxu0 0.0
    %751 = vmatpush.msra.mxu0 0.0
    %752 = vmatpush.msra.mxu0 0.0
    %753 = vmatpush.msra.mxu0 0.0
    %754 = vmatpush.msra.mxu0 0.0
    %755 = vmatpush.msra.mxu0 0.0
    %756 = vmatpush.msra.mxu0 0.0
    %757 = vmatpush.msra.mxu0 0.0
    %758 = vmatpush.msra.mxu0 0.0
    %759 = vmatpush.msra.mxu0 %v731
    %760 = vmatpush.msra.mxu0 %v730
    %761 = vmatmul.f32.gmra.mxu0 %v734
    %v762 = vpop.f32.mrf.mxu0
    %763 = vmatmul.f32.gmra.mxu0 %v737
    %v764 = vpop.f32.mrf.mxu0
    %765 = vmatmul.f32.gmra.mxu0 %v740
    %v766 = vpop.f32.mrf.mxu0
    %767 = vmatmul.f32.gmra.mxu0 %v743
    %v768 = vpop.f32.mrf.mxu0
    %v769 = vadd.f32 0.0, %v768
    %770 = vdwg.mxu0
    %v772 = vsel %vm732, %v724, 0
    %v775 = vsel %vm732, %v725, 0
    %v778 = vsel %vm732, %v726, 0
    %v781 = vsel %vm732, %v727, 0
    %783 = vmatpush.msra.mxu0 0.0
    %784 = vmatpush.msra.mxu0 0.0
    %785 = vmatpush.msra.mxu0 0.0
    %786 = vmatpush.msra.mxu0 0.0
    %787 = vmatpush.msra.mxu0 0.0
    %788 = vmatpush.msra.mxu0 0.0
    %789 = vmatpush.msra.mxu0 0.0
    %790 = vmatpush.msra.mxu0 0.0
    %791 = vmatpush.msra.mxu0 0.0
    %792 = vmatpush.msra.mxu0 0.0
    %793 = vmatpush.msra.mxu0 0.0
    %794 = vmatpush.msra.mxu0 0.0
    %795 = vmatpush.msra.mxu0 0.0
    %796 = vmatpush.msra.mxu0 0.0
    %797 = vmatpush.msra.mxu0 %v729
    %798 = vmatpush.msra.mxu0 %v728
    %799 = vmatmul.f32.gmra.mxu0 %v772
    %v800 = vpop.f32.mrf.mxu0
    %801 = vmatmul.f32.gmra.mxu0 %v775
    %v802 = vpop.f32.mrf.mxu0
    %803 = vmatmul.f32.gmra.mxu0 %v778
    %v804 = vpop.f32.mrf.mxu0
    %805 = vmatmul.f32.gmra.mxu0 %v781
    %v806 = vpop.f32.mrf.mxu0
    %v807 = vadd.f32 %v769, %v806
    %808 = vdwg.mxu0
    %v809 = vld [vmem:[%s14] sm:$0x1]
    %v811 = vperm.slane %v809, 0
    %v813 = vadd.f32 %v807, %v811
    %v814 = vmax.f32 %v813, 0.0
    %v815 = vld [vmem:[#allocation15] sm:$0xff]
    %v816 = vld [vmem:[%s16] sm:$0x1]
    %v818 = vperm.slane %v816, 0
    %820 = vmatpush.msra.mxu0 0.0
    %821 = vmatpush.msra.mxu0 0.0
    %822 = vmatpush.msra.mxu0 0.0
    %823 = vmatpush.msra.mxu0 0.0
    %824 = vmatpush.msra.mxu0 0.0
    %825 = vmatpush.msra.mxu0 0.0
    %826 = vmatpush.msra.mxu0 0.0
    %827 = vmatpush.msra.mxu0 0.0
    %828 = vmatpush.msra.mxu0 0.0
    %829 = vmatpush.msra.mxu0 0.0
    %830 = vmatpush.msra.mxu0 0.0
    %831 = vmatpush.msra.mxu0 0.0
    %832 = vmatpush.msra.mxu0 0.0
    %833 = vmatpush.msra.mxu0 0.0
    %834 = vmatpush.msra.mxu0 0.0
    %835 = vmatpush.msra.mxu0 %v815
    %836 = vmatmul.f32.gmra.mxu0 %v623
    %v837 = vpop.f32.mrf.mxu0
    %838 = vmatmul.f32.gmra.mxu0 %v626
    %v839 = vpop.f32.mrf.mxu0
    %840 = vmatmul.f32.gmra.mxu0 %v629
    %v841 = vpop.f32.mrf.mxu0
    %842 = vmatmul.f32.gmra.mxu0 %v632
    %v843 = vpop.f32.mrf.mxu0
    %v844 = vadd.f32 %v818, %v843
    %845 = vdwg.mxu0
    %v846 = vadd.f32 %v814, %v844
    %v847 = vmax.f32 %v846, 0.0
    %v848 = vld [vmem:[%s17] sm:$0xff]
    %v849 = vld [vmem:[%s17 + $0x8] sm:$0xff]
    %v850 = vld [vmem:[%s18] sm:$0x1]
    %v852 = vperm.slane %v850, 0
    %v855 = vrot.slane %v847, 6
    %v856 = vsel %vm732, %v855, 0
    %858 = vmatpush.msra.mxu0 0.0
    %859 = vmatpush.msra.mxu0 0.0
    %860 = vmatpush.msra.mxu0 0.0
    %861 = vmatpush.msra.mxu0 0.0
    %862 = vmatpush.msra.mxu0 0.0
    %863 = vmatpush.msra.mxu0 0.0
    %864 = vmatpush.msra.mxu0 0.0
    %865 = vmatpush.msra.mxu0 0.0
    %866 = vmatpush.msra.mxu0 0.0
    %867 = vmatpush.msra.mxu0 0.0
    %868 = vmatpush.msra.mxu0 0.0
    %869 = vmatpush.msra.mxu0 0.0
    %870 = vmatpush.msra.mxu0 0.0
    %871 = vmatpush.msra.mxu0 0.0
    %872 = vmatpush.msra.mxu0 %v849
    %873 = vmatpush.msra.mxu0 %v848
    %874 = vmatmul.f32.gmra.mxu0 %v856
    %v875 = vpop.f32.mrf.mxu0
    %v876 = vadd.f32 %v852, %v875
    %877 = vdwg.mxu0
    %v878 = vmax.f32 %v876, 0.0
    %v879 = vld [vmem:[%s19] sm:$0xff]
    %v880 = vld [vmem:[%s19 + $0x8] sm:$0xff]
    %v881 = vld [vmem:[%s20] sm:$0x1]
    %v883 = vperm.slane %v881, 0
    %v886 = vsel %vm732, %v878, 0
    %888 = vmatpush.msra.mxu0 0.0
    %889 = vmatpush.msra.mxu0 0.0
    %890 = vmatpush.msra.mxu0 0.0
    %891 = vmatpush.msra.mxu0 0.0
    %892 = vmatpush.msra.mxu0 0.0
    %893 = vmatpush.msra.mxu0 0.0
    %894 = vmatpush.msra.mxu0 0.0
    %895 = vmatpush.msra.mxu0 0.0
    %896 = vmatpush.msra.mxu0 0.0
    %897 = vmatpush.msra.mxu0 0.0
    %898 = vmatpush.msra.mxu0 0.0
    %899 = vmatpush.msra.mxu0 0.0
    %900 = vmatpush.msra.mxu0 0.0
    %901 = vmatpush.msra.mxu0 0.0
    %902 = vmatpush.msra.mxu0 %v880
    %903 = vmatpush.msra.mxu0 %v879
    %904 = vmatmul.f32.gmra.mxu0 %v886
    %v905 = vpop.f32.mrf.mxu0
    %v906 = vadd.f32 %v883, %v905
    %907 = vdwg.mxu0
    %v908 = vmax.f32 %v906, 0.0
    %v909 = vld [vmem:[%s21] sm:$0xff]
    %v910 = vld [vmem:[#allocation2] sm:$0x1]
    %v912 = vperm.slane %v910, 0
    %v915 = vsel %vm420, %v908, 0
    %917 = vmatpush.msra.mxu0 0.0
    %918 = vmatpush.msra.mxu0 0.0
    %919 = vmatpush.msra.mxu0 0.0
    %920 = vmatpush.msra.mxu0 0.0
    %921 = vmatpush.msra.mxu0 0.0
    %922 = vmatpush.msra.mxu0 0.0
    %923 = vmatpush.msra.mxu0 0.0
    %924 = vmatpush.msra.mxu0 0.0
    %925 = vmatpush.msra.mxu0 0.0
    %926 = vmatpush.msra.mxu0 0.0
    %927 = vmatpush.msra.mxu0 0.0
    %928 = vmatpush.msra.mxu0 0.0
    %929 = vmatpush.msra.mxu0 0.0
    %930 = vmatpush.msra.mxu0 0.0
    %931 = vmatpush.msra.mxu0 0.0
    %932 = vmatpush.msra.mxu0 %v909
    %933 = vmatmul.f32.gmra.mxu0 %v915
    %v934 = vpop.f32.mrf.mxu0
    %v935 = vadd.f32 %v912, %v934
    %936 = vdwg.mxu0
    %937 = vrot.lane.b32.xlu0 %v855, 1
    %v938 = vpop.permute.xlu0 %937
    %vm940 = vcmask 7168
    %v941 = vsel %vm940, %v935, %v938
    %vm942 = vcmask 138240
    %v943 = vsel %vm942, %v941, 0.0
    %944 = vst [vmem:[#allocation17] sm:$0x3] %v943
    // Predicated region
    $region126: #{tpu_custom_call.1} parent=1 // pred_check
      _
    $region127: #{tpu_custom_call.1} parent=1 // pred_check_branch
      %946 = sbr.rel (0) target = $region129
    $region128: #{tpu_custom_call.1} parent=1 // pred_region
      %948 = vsyncadd [#allocation5], 0
      %s950 = sshll.u32 [#allocation17], 4
      %s951 = int_to_ptr.vmem [resolvable:$true] %s950
      %s952 = sshll.u32 %s23, 4
      %s953 = int_to_ptr.hbm [resolvable:$true] %s952
      %955 = dma.vmem_to_hbm [thread:$0]  %s951, 32, %s953, [#allocation5]
    $region129: #{tpu_custom_call.1} parent=1 // pred_fallthru
      _
    // Predicated region
    $region130: #{tpu_custom_call.1} parent=1 // pred_check
      _
    $region131: #{tpu_custom_call.1} parent=1 // pred_check_branch
      %957 = sbr.rel (0) target = $region133
    $region132: #{tpu_custom_call.1} parent=1 // pred_region
      %959 = dma.done [#allocation5], 32
    $region133: #{tpu_custom_call.1} parent=1 // pred_fallthru
      _
    %960 = vsyncpa [#allocation4], 1
    %961 = vsyncpa [#allocation7], 1
    %962 = vsyncpa [#allocation10], 1
    %963 = vsyncpa [#allocation13], 1
    %964 = vsyncpa [#allocation16], 1
    %965 = vsyncpa [#allocation5], 1

</llo_original>
